<compile_context>
chip_gen: v7x
topology: tpu7x:2x2x1
jax: 0.10.0
libtpu: 0.0.40
codegen_flags: <defaults>
</compile_context>

<pallas_src>
import functools

import jax
import jax.numpy as jnp
from jax.experimental import pallas as pl
from jax.experimental.pallas import tpu as pltpu


# ----------------------------------------------------------------------------
# Fused multi-head self-attention kernel (one batch element per grid step)
# ----------------------------------------------------------------------------
def _mhsa_kernel(q_ref, k_ref, v_ref, mask_k_ref, mask_q_ref,
                 wq_ref, bq_ref, wk_ref, bk_ref, wv_ref, bv_ref,
                 wfc_ref, bfc_ref, o_ref, *, n_heads, head_dim, inv_scale):
    # q/k/v_ref : (L, H)   one batch element (batch dim squeezed away)
    # mask_k_ref: (1, L)   key-position mask, lane-dense
    # mask_q_ref: (L, 1)   query-position mask
    # w*_ref    : (H, H)   linear weights, (in, out) layout
    # b*_ref    : (1, H)   linear biases
    # o_ref     : (L, H)
    f32 = jnp.float32
    q = q_ref[...].astype(f32)
    k = k_ref[...].astype(f32)
    v = v_ref[...].astype(f32)
    mask_row = mask_k_ref[...]                                      # (1, L)

    qh = jnp.dot(q, wq_ref[...], preferred_element_type=f32) + bq_ref[...]
    kh = jnp.dot(k, wk_ref[...], preferred_element_type=f32) + bk_ref[...]
    vh = jnp.dot(v, wv_ref[...], preferred_element_type=f32) + bv_ref[...]

    # Per-head scaled dot-product attention (n_heads is small and static).
    ctx_parts = []
    for h in range(n_heads):
        lo = h * head_dim
        qh_h = qh[:, lo:lo + head_dim]                              # (L, d)
        kh_h = kh[:, lo:lo + head_dim]
        vh_h = vh[:, lo:lo + head_dim]
        # energy = Q @ K^T / sqrt(d); contract last dims (no transpose copy).
        e = jax.lax.dot_general(qh_h, kh_h, (((1,), (1,)), ((), ())),
                                preferred_element_type=f32) * inv_scale
        e = jnp.where(mask_row == 0.0, -1e10, e)                    # mask keys
        e = e - jnp.max(e, axis=-1, keepdims=True)                  # stable softmax
        p = jnp.exp(e)
        attn = p / jnp.sum(p, axis=-1, keepdims=True)               # dropout = id
        ctx_parts.append(jnp.dot(attn, vh_h, preferred_element_type=f32))
    ctx = jnp.concatenate(ctx_parts, axis=-1)                       # (L, H)

    out = jnp.dot(ctx, wfc_ref[...], preferred_element_type=f32) + bfc_ref[...]
    out = out * mask_q_ref[...]                                     # mask queries
    o_ref[...] = out.astype(o_ref.dtype)


def self_attention_layer(q, k, v, params, mask=None, *, n_heads):
    """mask: (B, L) float/bool, 1 = valid token, 0 = padding (or None)."""
    B, L, H = q.shape
    assert H % n_heads == 0
    head_dim = H // n_heads
    if mask is None:
        mask = jnp.ones((B, L), jnp.float32)
    mask = mask.astype(jnp.float32)
    mask_k = mask[:, None, :]                                       # (B, 1, L)
    mask_q = mask[:, :, None]                                       # (B, L, 1)

    kernel = functools.partial(
        _mhsa_kernel, n_heads=n_heads, head_dim=head_dim,
        inv_scale=1.0 / (float(head_dim) ** 0.5))

    act_spec = pl.BlockSpec((None, L, H), lambda b: (b, 0, 0))
    w_spec = pl.BlockSpec((H, H), lambda b: (0, 0))
    b_spec = pl.BlockSpec((1, H), lambda b: (0, 0))

    return pl.pallas_call(
        kernel,
        out_shape=jax.ShapeDtypeStruct((B, L, H), jnp.float32),
        grid=(B,),
        in_specs=[
            act_spec, act_spec, act_spec,                           # q, k, v
            pl.BlockSpec((None, 1, L), lambda b: (b, 0, 0)),        # mask (keys)
            pl.BlockSpec((None, L, 1), lambda b: (b, 0, 0)),        # mask (queries)
            w_spec, b_spec,                                         # w_q, b_q
            w_spec, b_spec,                                         # w_k, b_k
            w_spec, b_spec,                                         # w_v, b_v
            w_spec, b_spec,                                         # fc
        ],
        out_specs=act_spec,
        compiler_params=pltpu.CompilerParams(
            dimension_semantics=("parallel",)),
    )(q, k, v, mask_k, mask_q,
      params["wq"], params["bq"], params["wk"], params["bk"],
      params["wv"], params["bv"], params["wfc"], params["bfc"])


# ----------------------------------------------------------------------------
# Pure-JAX reference (mirrors the PyTorch forward) for correctness checking
# ----------------------------------------------------------------------------
def reference_forward(q, k, v, params, mask, n_heads):
    B, L, H = q.shape
    hd = H // n_heads

    def heads(x, w, b):
        y = x @ w + b
        return jnp.transpose(y.reshape(B, L, n_heads, hd), (0, 2, 1, 3))

    Q = heads(q, params["wq"], params["bq"])
    K = heads(k, params["wk"], params["bk"])
    V = heads(v, params["wv"], params["bv"])
    energy = jnp.einsum("bhqd,bhkd->bhqk", Q, K) / (float(hd) ** 0.5)
    energy = jnp.where(mask[:, None, None, :] == 0.0, -1e10, energy)
    attn = jax.nn.softmax(energy, axis=-1)
    x = jnp.einsum("bhqk,bhkd->bhqd", attn, V)
    x = jnp.transpose(x, (0, 2, 1, 3)).reshape(B, L, H)
    x = x @ params["wfc"] + params["bfc"]
    return x * mask[:, :, None]


# ----------------------------------------------------------------------------
# Deterministic parameter construction
# ----------------------------------------------------------------------------
def make_params(key, hid_dim):
    ks = jax.random.split(key, 8)

    def init(kk, shape, scale):
        return scale * jax.random.normal(kk, shape, jnp.float32)

    return dict(
        wq=init(ks[0], (hid_dim, hid_dim), 0.1), bq=init(ks[1], (1, hid_dim), 0.05),
        wk=init(ks[2], (hid_dim, hid_dim), 0.1), bk=init(ks[3], (1, hid_dim), 0.05),
        wv=init(ks[4], (hid_dim, hid_dim), 0.1), bv=init(ks[5], (1, hid_dim), 0.05),
        wfc=init(ks[6], (hid_dim, hid_dim), 0.1), bfc=init(ks[7], (1, hid_dim), 0.05),
    )


if __name__ == "__main__":
    # Small config: batch=2, seq_len=16, hid_dim=128 (lane-dense), 4 heads.
    B, L, H, N_HEADS = 2, 16, 128, 4

    key = jax.random.PRNGKey(0)
    kq, kk, kv, kp = jax.random.split(key, 4)
    q = jax.random.normal(kq, (B, L, H), jnp.float32)
    k = jax.random.normal(kk, (B, L, H), jnp.float32)
    v = jax.random.normal(kv, (B, L, H), jnp.float32)

    # Padding mask: batch 0 fully valid, batch 1 has 5 padded tail positions.
    lengths = jnp.array([L, L - 5], jnp.int32)
    mask = (jnp.arange(L)[None, :] < lengths[:, None]).astype(jnp.float32)

    params = make_params(kp, H)

    out = self_attention_layer(q, k, v, params, mask, n_heads=N_HEADS)
    out = jax.block_until_ready(out)

    ref = reference_forward(q, k, v, params, mask, N_HEADS)
    assert out.shape == (B, L, H)
    assert bool(jnp.all(jnp.isfinite(out)))
    assert jnp.allclose(out, ref, atol=2e-4, rtol=2e-4), \
        float(jnp.max(jnp.abs(out - ref)))
    print("KERNEL_OK")
</pallas_src>

<mosaic_0001>
module attributes {stable_mosaic.version = 11 : i64} {
  func.func @_mhsa_kernel(%arg0: i32, %arg1: memref<1x16x128xf32, #tpu.memory_space<vmem>>, %arg2: memref<1x16x128xf32, #tpu.memory_space<vmem>>, %arg3: memref<1x16x128xf32, #tpu.memory_space<vmem>>, %arg4: memref<1x1x16xf32, #tpu.memory_space<vmem>>, %arg5: memref<1x16x1xf32, #tpu.memory_space<vmem>>, %arg6: memref<128x128xf32, #tpu.memory_space<vmem>>, %arg7: memref<1x128xf32, #tpu.memory_space<vmem>>, %arg8: memref<128x128xf32, #tpu.memory_space<vmem>>, %arg9: memref<1x128xf32, #tpu.memory_space<vmem>>, %arg10: memref<128x128xf32, #tpu.memory_space<vmem>>, %arg11: memref<1x128xf32, #tpu.memory_space<vmem>>, %arg12: memref<128x128xf32, #tpu.memory_space<vmem>>, %arg13: memref<1x128xf32, #tpu.memory_space<vmem>>, %arg14: memref<1x16x128xf32, #tpu.memory_space<vmem>>) attributes {dimension_semantics = [#tpu.dimension_semantics<parallel>], iteration_bounds = array<i64: 2>, scalar_prefetch = 0 : i64, scratch_operands = 0 : i64, tpu.core_type = #tpu.core_type<tc>, window_params = [{transform_indices = @transform_0, window_bounds = array<i64: 1, 16, 128>}, {transform_indices = @transform_1, window_bounds = array<i64: 1, 16, 128>}, {transform_indices = @transform_2, window_bounds = array<i64: 1, 16, 128>}, {transform_indices = @transform_3, window_bounds = array<i64: 1, 1, 16>}, {transform_indices = @transform_4, window_bounds = array<i64: 1, 16, 1>}, {pipeline_mode = #tpu.pipeline_mode<synchronous>, transform_indices = @transform_5, window_bounds = array<i64: 128, 128>}, {pipeline_mode = #tpu.pipeline_mode<synchronous>, transform_indices = @transform_6, window_bounds = array<i64: 1, 128>}, {pipeline_mode = #tpu.pipeline_mode<synchronous>, transform_indices = @transform_7, window_bounds = array<i64: 128, 128>}, {pipeline_mode = #tpu.pipeline_mode<synchronous>, transform_indices = @transform_8, window_bounds = array<i64: 1, 128>}, {pipeline_mode = #tpu.pipeline_mode<synchronous>, transform_indices = @transform_9, window_bounds = array<i64: 128, 128>}, {pipeline_mode = #tpu.pipeline_mode<synchronous>, transform_indices = @transform_10, window_bounds = array<i64: 1, 128>}, {pipeline_mode = #tpu.pipeline_mode<synchronous>, transform_indices = @transform_11, window_bounds = array<i64: 128, 128>}, {pipeline_mode = #tpu.pipeline_mode<synchronous>, transform_indices = @transform_12, window_bounds = array<i64: 1, 128>}, {transform_indices = @transform_13, window_bounds = array<i64: 1, 16, 128>}]} {
    %c0 = arith.constant 0 : index
    %c0_0 = arith.constant 0 : index
    %c0_1 = arith.constant 0 : index
    %0 = vector.load %arg1[%c0, %c0_0, %c0_1] : memref<1x16x128xf32, #tpu.memory_space<vmem>>, vector<1x16x128xf32>
    %1 = vector.shape_cast %0 : vector<1x16x128xf32> to vector<16x128xf32>
    %c0_2 = arith.constant 0 : index
    %c0_3 = arith.constant 0 : index
    %c0_4 = arith.constant 0 : index
    %2 = vector.load %arg2[%c0_2, %c0_3, %c0_4] : memref<1x16x128xf32, #tpu.memory_space<vmem>>, vector<1x16x128xf32>
    %3 = vector.shape_cast %2 : vector<1x16x128xf32> to vector<16x128xf32>
    %c0_5 = arith.constant 0 : index
    %c0_6 = arith.constant 0 : index
    %c0_7 = arith.constant 0 : index
    %4 = vector.load %arg3[%c0_5, %c0_6, %c0_7] : memref<1x16x128xf32, #tpu.memory_space<vmem>>, vector<1x16x128xf32>
    %5 = vector.shape_cast %4 : vector<1x16x128xf32> to vector<16x128xf32>
    %c0_8 = arith.constant 0 : index
    %c0_9 = arith.constant 0 : index
    %c0_10 = arith.constant 0 : index
    %6 = vector.load %arg4[%c0_8, %c0_9, %c0_10] : memref<1x1x16xf32, #tpu.memory_space<vmem>>, vector<1x1x16xf32>
    %7 = vector.shape_cast %6 : vector<1x1x16xf32> to vector<1x16xf32>
    %c0_11 = arith.constant 0 : index
    %c0_12 = arith.constant 0 : index
    %8 = vector.load %arg6[%c0_11, %c0_12] : memref<128x128xf32, #tpu.memory_space<vmem>>, vector<128x128xf32>
    %cst = arith.constant dense<0.000000e+00> : vector<16x128xf32>
    %9 = tpu.matmul %1, %8, %cst {dimension_numbers = #tpu.dot_dimension_numbers<[1], [0], [0], [1], [0, 0, 1, 1], [], []>} : vector<16x128xf32>, vector<128x128xf32>, vector<16x128xf32> -> vector<16x128xf32>
    %c0_13 = arith.constant 0 : index
    %c0_14 = arith.constant 0 : index
    %10 = vector.load %arg7[%c0_13, %c0_14] : memref<1x128xf32, #tpu.memory_space<vmem>>, vector<1x128xf32>
    %11 = vector.broadcast %10 : vector<1x128xf32> to vector<16x128xf32>
    %12 = arith.addf %9, %11 : vector<16x128xf32>
    %c0_15 = arith.constant 0 : index
    %c0_16 = arith.constant 0 : index
    %13 = vector.load %arg8[%c0_15, %c0_16] : memref<128x128xf32, #tpu.memory_space<vmem>>, vector<128x128xf32>
    %cst_17 = arith.constant dense<0.000000e+00> : vector<16x128xf32>
    %14 = tpu.matmul %3, %13, %cst_17 {dimension_numbers = #tpu.dot_dimension_numbers<[1], [0], [0], [1], [0, 0, 1, 1], [], []>} : vector<16x128xf32>, vector<128x128xf32>, vector<16x128xf32> -> vector<16x128xf32>
    %c0_18 = arith.constant 0 : index
    %c0_19 = arith.constant 0 : index
    %15 = vector.load %arg9[%c0_18, %c0_19] : memref<1x128xf32, #tpu.memory_space<vmem>>, vector<1x128xf32>
    %16 = vector.broadcast %15 : vector<1x128xf32> to vector<16x128xf32>
    %17 = arith.addf %14, %16 : vector<16x128xf32>
    %c0_20 = arith.constant 0 : index
    %c0_21 = arith.constant 0 : index
    %18 = vector.load %arg10[%c0_20, %c0_21] : memref<128x128xf32, #tpu.memory_space<vmem>>, vector<128x128xf32>
    %cst_22 = arith.constant dense<0.000000e+00> : vector<16x128xf32>
    %19 = tpu.matmul %5, %18, %cst_22 {dimension_numbers = #tpu.dot_dimension_numbers<[1], [0], [0], [1], [0, 0, 1, 1], [], []>} : vector<16x128xf32>, vector<128x128xf32>, vector<16x128xf32> -> vector<16x128xf32>
    %c0_23 = arith.constant 0 : index
    %c0_24 = arith.constant 0 : index
    %20 = vector.load %arg11[%c0_23, %c0_24] : memref<1x128xf32, #tpu.memory_space<vmem>>, vector<1x128xf32>
    %21 = vector.broadcast %20 : vector<1x128xf32> to vector<16x128xf32>
    %22 = arith.addf %19, %21 : vector<16x128xf32>
    %23 = vector.extract_strided_slice %12 {offsets = [0, 0], sizes = [16, 32], strides = [1, 1]} : vector<16x128xf32> to vector<16x32xf32>
    %24 = vector.extract_strided_slice %17 {offsets = [0, 0], sizes = [16, 32], strides = [1, 1]} : vector<16x128xf32> to vector<16x32xf32>
    %25 = vector.extract_strided_slice %22 {offsets = [0, 0], sizes = [16, 32], strides = [1, 1]} : vector<16x128xf32> to vector<16x32xf32>
    %cst_25 = arith.constant dense<0.000000e+00> : vector<16x16xf32>
    %26 = tpu.matmul %23, %24, %cst_25 {dimension_numbers = #tpu.dot_dimension_numbers<[1], [1], [0], [0], [0, 0, 1, 0], [], []>} : vector<16x32xf32>, vector<16x32xf32>, vector<16x16xf32> -> vector<16x16xf32>
    %cst_26 = arith.constant 0.176776692 : f32
    %27 = vector.broadcast %cst_26 : f32 to vector<16x16xf32>
    %28 = arith.mulf %26, %27 : vector<16x16xf32>
    %cst_27 = arith.constant 0.000000e+00 : f32
    %29 = vector.broadcast %cst_27 : f32 to vector<1x16xf32>
    %30 = arith.cmpf oeq, %7, %29 : vector<1x16xf32>
    %cst_28 = arith.constant -1.000000e+10 : f32
    %31 = vector.shape_cast %30 : vector<1x16xi1> to vector<1x16xi1>
    %32 = vector.broadcast %31 : vector<1x16xi1> to vector<16x16xi1>
    %33 = vector.broadcast %cst_28 : f32 to vector<16x16xf32>
    %34 = arith.select %32, %33, %28 : vector<16x16xi1>, vector<16x16xf32>
    %cst_29 = arith.constant dense<0xFF800000> : vector<16xf32>
    %35 = vector.multi_reduction <maximumf>, %34, %cst_29 [1] : vector<16x16xf32> to vector<16xf32>
    %36 = vector.shape_cast %35 : vector<16xf32> to vector<16x1xf32>
    %37 = vector.broadcast %36 : vector<16x1xf32> to vector<16x16xf32>
    %38 = arith.subf %34, %37 : vector<16x16xf32>
    %39 = math.exp %38 : vector<16x16xf32>
    %cst_30 = arith.constant dense<0.000000e+00> : vector<16xf32>
    %40 = vector.multi_reduction <add>, %39, %cst_30 [1] : vector<16x16xf32> to vector<16xf32>
    %41 = vector.shape_cast %40 : vector<16xf32> to vector<16x1xf32>
    %42 = vector.broadcast %41 : vector<16x1xf32> to vector<16x16xf32>
    %43 = arith.divf %39, %42 : vector<16x16xf32>
    %cst_31 = arith.constant dense<0.000000e+00> : vector<16x32xf32>
    %44 = tpu.matmul %43, %25, %cst_31 {dimension_numbers = #tpu.dot_dimension_numbers<[1], [0], [0], [1], [0, 0, 1, 1], [], []>} : vector<16x16xf32>, vector<16x32xf32>, vector<16x32xf32> -> vector<16x32xf32>
    %45 = vector.extract_strided_slice %12 {offsets = [0, 32], sizes = [16, 32], strides = [1, 1]} : vector<16x128xf32> to vector<16x32xf32>
    %46 = vector.extract_strided_slice %17 {offsets = [0, 32], sizes = [16, 32], strides = [1, 1]} : vector<16x128xf32> to vector<16x32xf32>
    %47 = vector.extract_strided_slice %22 {offsets = [0, 32], sizes = [16, 32], strides = [1, 1]} : vector<16x128xf32> to vector<16x32xf32>
    %cst_32 = arith.constant dense<0.000000e+00> : vector<16x16xf32>
    %48 = tpu.matmul %45, %46, %cst_32 {dimension_numbers = #tpu.dot_dimension_numbers<[1], [1], [0], [0], [0, 0, 1, 0], [], []>} : vector<16x32xf32>, vector<16x32xf32>, vector<16x16xf32> -> vector<16x16xf32>
    %cst_33 = arith.constant 0.176776692 : f32
    %49 = vector.broadcast %cst_33 : f32 to vector<16x16xf32>
    %50 = arith.mulf %48, %49 : vector<16x16xf32>
    %cst_34 = arith.constant 0.000000e+00 : f32
    %51 = vector.broadcast %cst_34 : f32 to vector<1x16xf32>
    %52 = arith.cmpf oeq, %7, %51 : vector<1x16xf32>
    %cst_35 = arith.constant -1.000000e+10 : f32
    %53 = vector.shape_cast %52 : vector<1x16xi1> to vector<1x16xi1>
    %54 = vector.broadcast %53 : vector<1x16xi1> to vector<16x16xi1>
    %55 = vector.broadcast %cst_35 : f32 to vector<16x16xf32>
    %56 = arith.select %54, %55, %50 : vector<16x16xi1>, vector<16x16xf32>
    %cst_36 = arith.constant dense<0xFF800000> : vector<16xf32>
    %57 = vector.multi_reduction <maximumf>, %56, %cst_36 [1] : vector<16x16xf32> to vector<16xf32>
    %58 = vector.shape_cast %57 : vector<16xf32> to vector<16x1xf32>
    %59 = vector.broadcast %58 : vector<16x1xf32> to vector<16x16xf32>
    %60 = arith.subf %56, %59 : vector<16x16xf32>
    %61 = math.exp %60 : vector<16x16xf32>
    %cst_37 = arith.constant dense<0.000000e+00> : vector<16xf32>
    %62 = vector.multi_reduction <add>, %61, %cst_37 [1] : vector<16x16xf32> to vector<16xf32>
    %63 = vector.shape_cast %62 : vector<16xf32> to vector<16x1xf32>
    %64 = vector.broadcast %63 : vector<16x1xf32> to vector<16x16xf32>
    %65 = arith.divf %61, %64 : vector<16x16xf32>
    %cst_38 = arith.constant dense<0.000000e+00> : vector<16x32xf32>
    %66 = tpu.matmul %65, %47, %cst_38 {dimension_numbers = #tpu.dot_dimension_numbers<[1], [0], [0], [1], [0, 0, 1, 1], [], []>} : vector<16x16xf32>, vector<16x32xf32>, vector<16x32xf32> -> vector<16x32xf32>
    %67 = vector.extract_strided_slice %12 {offsets = [0, 64], sizes = [16, 32], strides = [1, 1]} : vector<16x128xf32> to vector<16x32xf32>
    %68 = vector.extract_strided_slice %17 {offsets = [0, 64], sizes = [16, 32], strides = [1, 1]} : vector<16x128xf32> to vector<16x32xf32>
    %69 = vector.extract_strided_slice %22 {offsets = [0, 64], sizes = [16, 32], strides = [1, 1]} : vector<16x128xf32> to vector<16x32xf32>
    %cst_39 = arith.constant dense<0.000000e+00> : vector<16x16xf32>
    %70 = tpu.matmul %67, %68, %cst_39 {dimension_numbers = #tpu.dot_dimension_numbers<[1], [1], [0], [0], [0, 0, 1, 0], [], []>} : vector<16x32xf32>, vector<16x32xf32>, vector<16x16xf32> -> vector<16x16xf32>
    %cst_40 = arith.constant 0.176776692 : f32
    %71 = vector.broadcast %cst_40 : f32 to vector<16x16xf32>
    %72 = arith.mulf %70, %71 : vector<16x16xf32>
    %cst_41 = arith.constant 0.000000e+00 : f32
    %73 = vector.broadcast %cst_41 : f32 to vector<1x16xf32>
    %74 = arith.cmpf oeq, %7, %73 : vector<1x16xf32>
    %cst_42 = arith.constant -1.000000e+10 : f32
    %75 = vector.shape_cast %74 : vector<1x16xi1> to vector<1x16xi1>
    %76 = vector.broadcast %75 : vector<1x16xi1> to vector<16x16xi1>
    %77 = vector.broadcast %cst_42 : f32 to vector<16x16xf32>
    %78 = arith.select %76, %77, %72 : vector<16x16xi1>, vector<16x16xf32>
    %cst_43 = arith.constant dense<0xFF800000> : vector<16xf32>
    %79 = vector.multi_reduction <maximumf>, %78, %cst_43 [1] : vector<16x16xf32> to vector<16xf32>
    %80 = vector.shape_cast %79 : vector<16xf32> to vector<16x1xf32>
    %81 = vector.broadcast %80 : vector<16x1xf32> to vector<16x16xf32>
    %82 = arith.subf %78, %81 : vector<16x16xf32>
    %83 = math.exp %82 : vector<16x16xf32>
    %cst_44 = arith.constant dense<0.000000e+00> : vector<16xf32>
    %84 = vector.multi_reduction <add>, %83, %cst_44 [1] : vector<16x16xf32> to vector<16xf32>
    %85 = vector.shape_cast %84 : vector<16xf32> to vector<16x1xf32>
    %86 = vector.broadcast %85 : vector<16x1xf32> to vector<16x16xf32>
    %87 = arith.divf %83, %86 : vector<16x16xf32>
    %cst_45 = arith.constant dense<0.000000e+00> : vector<16x32xf32>
    %88 = tpu.matmul %87, %69, %cst_45 {dimension_numbers = #tpu.dot_dimension_numbers<[1], [0], [0], [1], [0, 0, 1, 1], [], []>} : vector<16x16xf32>, vector<16x32xf32>, vector<16x32xf32> -> vector<16x32xf32>
    %89 = vector.extract_strided_slice %12 {offsets = [0, 96], sizes = [16, 32], strides = [1, 1]} : vector<16x128xf32> to vector<16x32xf32>
    %90 = vector.extract_strided_slice %17 {offsets = [0, 96], sizes = [16, 32], strides = [1, 1]} : vector<16x128xf32> to vector<16x32xf32>
    %91 = vector.extract_strided_slice %22 {offsets = [0, 96], sizes = [16, 32], strides = [1, 1]} : vector<16x128xf32> to vector<16x32xf32>
    %cst_46 = arith.constant dense<0.000000e+00> : vector<16x16xf32>
    %92 = tpu.matmul %89, %90, %cst_46 {dimension_numbers = #tpu.dot_dimension_numbers<[1], [1], [0], [0], [0, 0, 1, 0], [], []>} : vector<16x32xf32>, vector<16x32xf32>, vector<16x16xf32> -> vector<16x16xf32>
    %cst_47 = arith.constant 0.176776692 : f32
    %93 = vector.broadcast %cst_47 : f32 to vector<16x16xf32>
    %94 = arith.mulf %92, %93 : vector<16x16xf32>
    %cst_48 = arith.constant 0.000000e+00 : f32
    %95 = vector.broadcast %cst_48 : f32 to vector<1x16xf32>
    %96 = arith.cmpf oeq, %7, %95 : vector<1x16xf32>
    %cst_49 = arith.constant -1.000000e+10 : f32
    %97 = vector.shape_cast %96 : vector<1x16xi1> to vector<1x16xi1>
    %98 = vector.broadcast %97 : vector<1x16xi1> to vector<16x16xi1>
    %99 = vector.broadcast %cst_49 : f32 to vector<16x16xf32>
    %100 = arith.select %98, %99, %94 : vector<16x16xi1>, vector<16x16xf32>
    %cst_50 = arith.constant dense<0xFF800000> : vector<16xf32>
    %101 = vector.multi_reduction <maximumf>, %100, %cst_50 [1] : vector<16x16xf32> to vector<16xf32>
    %102 = vector.shape_cast %101 : vector<16xf32> to vector<16x1xf32>
    %103 = vector.broadcast %102 : vector<16x1xf32> to vector<16x16xf32>
    %104 = arith.subf %100, %103 : vector<16x16xf32>
    %105 = math.exp %104 : vector<16x16xf32>
    %cst_51 = arith.constant dense<0.000000e+00> : vector<16xf32>
    %106 = vector.multi_reduction <add>, %105, %cst_51 [1] : vector<16x16xf32> to vector<16xf32>
    %107 = vector.shape_cast %106 : vector<16xf32> to vector<16x1xf32>
    %108 = vector.broadcast %107 : vector<16x1xf32> to vector<16x16xf32>
    %109 = arith.divf %105, %108 : vector<16x16xf32>
    %cst_52 = arith.constant dense<0.000000e+00> : vector<16x32xf32>
    %110 = tpu.matmul %109, %91, %cst_52 {dimension_numbers = #tpu.dot_dimension_numbers<[1], [0], [0], [1], [0, 0, 1, 1], [], []>} : vector<16x16xf32>, vector<16x32xf32>, vector<16x32xf32> -> vector<16x32xf32>
    %111 = tpu.concatenate %44, %66, %88, %110 in 1 : vector<16x32xf32>, vector<16x32xf32>, vector<16x32xf32>, vector<16x32xf32> -> vector<16x128xf32>
    %c0_53 = arith.constant 0 : index
    %c0_54 = arith.constant 0 : index
    %112 = vector.load %arg12[%c0_53, %c0_54] : memref<128x128xf32, #tpu.memory_space<vmem>>, vector<128x128xf32>
    %cst_55 = arith.constant dense<0.000000e+00> : vector<16x128xf32>
    %113 = tpu.matmul %111, %112, %cst_55 {dimension_numbers = #tpu.dot_dimension_numbers<[1], [0], [0], [1], [0, 0, 1, 1], [], []>} : vector<16x128xf32>, vector<128x128xf32>, vector<16x128xf32> -> vector<16x128xf32>
    %c0_56 = arith.constant 0 : index
    %c0_57 = arith.constant 0 : index
    %114 = vector.load %arg13[%c0_56, %c0_57] : memref<1x128xf32, #tpu.memory_space<vmem>>, vector<1x128xf32>
    %115 = vector.broadcast %114 : vector<1x128xf32> to vector<16x128xf32>
    %116 = arith.addf %113, %115 : vector<16x128xf32>
    %c0_58 = arith.constant 0 : index
    %c0_59 = arith.constant 0 : index
    %c0_60 = arith.constant 0 : index
    %117 = vector.load %arg5[%c0_58, %c0_59, %c0_60] : memref<1x16x1xf32, #tpu.memory_space<vmem>>, vector<1x16x1xf32>
    %118 = vector.shape_cast %117 : vector<1x16x1xf32> to vector<16x1xf32>
    %119 = vector.broadcast %118 : vector<16x1xf32> to vector<16x128xf32>
    %120 = arith.mulf %116, %119 : vector<16x128xf32>
    %c0_61 = arith.constant 0 : index
    %c0_62 = arith.constant 0 : index
    %c0_63 = arith.constant 0 : index
    %121 = vector.load %arg14[%c0_61, %c0_62, %c0_63] : memref<1x16x128xf32, #tpu.memory_space<vmem>>, vector<1x16x128xf32>
    %122 = vector.shape_cast %121 : vector<1x16x128xf32> to vector<16x128xf32>
    %123 = vector.shape_cast %120 : vector<16x128xf32> to vector<1x16x128xf32>
    tpu.vector_store %arg14[%c0_61, %c0_62, %c0_63], %123 {strides = array<i32>} : memref<1x16x128xf32, #tpu.memory_space<vmem>>, vector<1x16x128xf32>,
    return
  }
  func.func @transform_0(%arg0: i32) -> (i32, i32, i32) {
    %c0_i32 = arith.constant 0 : i32
    %c0_i32_0 = arith.constant 0 : i32
    %c0_i32_1 = arith.constant 0 : i32
    return %arg0, %c0_i32, %c0_i32_0 : i32, i32, i32
  }
  func.func @transform_1(%arg0: i32) -> (i32, i32, i32) {
    %c0_i32 = arith.constant 0 : i32
    %c0_i32_0 = arith.constant 0 : i32
    %c0_i32_1 = arith.constant 0 : i32
    return %arg0, %c0_i32, %c0_i32_0 : i32, i32, i32
  }
  func.func @transform_2(%arg0: i32) -> (i32, i32, i32) {
    %c0_i32 = arith.constant 0 : i32
    %c0_i32_0 = arith.constant 0 : i32
    %c0_i32_1 = arith.constant 0 : i32
    return %arg0, %c0_i32, %c0_i32_0 : i32, i32, i32
  }
  func.func @transform_3(%arg0: i32) -> (i32, i32, i32) {
    %c0_i32 = arith.constant 0 : i32
    %c0_i32_0 = arith.constant 0 : i32
    %c0_i32_1 = arith.constant 0 : i32
    return %arg0, %c0_i32, %c0_i32_0 : i32, i32, i32
  }
  func.func @transform_4(%arg0: i32) -> (i32, i32, i32) {
    %c0_i32 = arith.constant 0 : i32
    %c0_i32_0 = arith.constant 0 : i32
    %c0_i32_1 = arith.constant 0 : i32
    return %arg0, %c0_i32, %c0_i32_0 : i32, i32, i32
  }
  func.func @transform_5(%arg0: i32) -> (i32, i32) {
    %c0_i32 = arith.constant 0 : i32
    %c0_i32_0 = arith.constant 0 : i32
    %c0_i32_1 = arith.constant 0 : i32
    return %c0_i32, %c0_i32_0 : i32, i32
  }
  func.func @transform_6(%arg0: i32) -> (i32, i32) {
    %c0_i32 = arith.constant 0 : i32
    %c0_i32_0 = arith.constant 0 : i32
    %c0_i32_1 = arith.constant 0 : i32
    return %c0_i32, %c0_i32_0 : i32, i32
  }
  func.func @transform_7(%arg0: i32) -> (i32, i32) {
    %c0_i32 = arith.constant 0 : i32
    %c0_i32_0 = arith.constant 0 : i32
    %c0_i32_1 = arith.constant 0 : i32
    return %c0_i32, %c0_i32_0 : i32, i32
  }
  func.func @transform_8(%arg0: i32) -> (i32, i32) {
    %c0_i32 = arith.constant 0 : i32
    %c0_i32_0 = arith.constant 0 : i32
    %c0_i32_1 = arith.constant 0 : i32
    return %c0_i32, %c0_i32_0 : i32, i32
  }
  func.func @transform_9(%arg0: i32) -> (i32, i32) {
    %c0_i32 = arith.constant 0 : i32
    %c0_i32_0 = arith.constant 0 : i32
    %c0_i32_1 = arith.constant 0 : i32
    return %c0_i32, %c0_i32_0 : i32, i32
  }
  func.func @transform_10(%arg0: i32) -> (i32, i32) {
    %c0_i32 = arith.constant 0 : i32
    %c0_i32_0 = arith.constant 0 : i32
    %c0_i32_1 = arith.constant 0 : i32
    return %c0_i32, %c0_i32_0 : i32, i32
  }
  func.func @transform_11(%arg0: i32) -> (i32, i32) {
    %c0_i32 = arith.constant 0 : i32
    %c0_i32_0 = arith.constant 0 : i32
    %c0_i32_1 = arith.constant 0 : i32
    return %c0_i32, %c0_i32_0 : i32, i32
  }
  func.func @transform_12(%arg0: i32) -> (i32, i32) {
    %c0_i32 = arith.constant 0 : i32
    %c0_i32_0 = arith.constant 0 : i32
    %c0_i32_1 = arith.constant 0 : i32
    return %c0_i32, %c0_i32_0 : i32, i32
  }
  func.func @transform_13(%arg0: i32) -> (i32, i32, i32) {
    %c0_i32 = arith.constant 0 : i32
    %c0_i32_0 = arith.constant 0 : i32
    %c0_i32_1 = arith.constant 0 : i32
    return %arg0, %c0_i32, %c0_i32_0 : i32, i32, i32
  }
}

</mosaic_0001>

<llo_original>
// kernel: tpu_custom_call.1
$region0: #{tpu_custom_call.1}
  #allocation0 [shape = 'u32[]', space=smem, size = 0x4, offset = 0x4, fixed_abs, tag = 'smem constant byte address 0x4 - core index']
  #allocation1 [shape = 'u32[144,128]{1,0:T(1,128)}', space=vmem, size = 0x12000, scoped, tag = 'internal scratch']
  %s0 = inlined_call_operand.vmem [shape: f32[2,16,128], index: 0, kind: input, shape index: {}]
  %s1 = inlined_call_operand.hbm [shape: f32[2,16,128], index: 1, kind: input, shape index: {}]
  %s2 = inlined_call_operand.hbm [shape: f32[2,16,128], index: 2, kind: input, shape index: {}]
  %s3 = inlined_call_operand.vmem [shape: f32[2,1,16], index: 3, kind: input, shape index: {}]
  %s4 = inlined_call_operand.vmem [shape: f32[2,16,1], index: 4, kind: input, shape index: {}]
  %s5 = inlined_call_operand.hbm [shape: f32[128,128], index: 5, kind: input, shape index: {}]
  %s6 = inlined_call_operand.vmem [shape: f32[1,128], index: 6, kind: input, shape index: {}]
  %s7 = inlined_call_operand.hbm [shape: f32[128,128], index: 7, kind: input, shape index: {}]
  %s8 = inlined_call_operand.vmem [shape: f32[1,128], index: 8, kind: input, shape index: {}]
  %s9 = inlined_call_operand.hbm [shape: f32[128,128], index: 9, kind: input, shape index: {}]
  %s10 = inlined_call_operand.vmem [shape: f32[1,128], index: 10, kind: input, shape index: {}]
  %s11 = inlined_call_operand.hbm [shape: f32[128,128], index: 11, kind: input, shape index: {}]
  %s12 = inlined_call_operand.vmem [shape: f32[1,128], index: 12, kind: input, shape index: {}]
  %s13 = inlined_call_operand.hbm [shape: f32[2,16,128], index: 13, kind: output, shape index: {}]
  %s14 = sld [smem:[#allocation0]]
  $region109: #{tpu_custom_call.1} parent=0
    _
  %s16 = ssub.s32 1, %s14
  %s17 = scalar_select 0, %s16, %s14
  $region1: #{tpu_custom_call.1} parent=0
    #allocation2 [shape = 'u8[16384]{0}', space=vmem, size = 0x4000, scoped, tag = 'input window, operand 1']
    #allocation3 [shape = 's32[2]{0}', space=sflag, size = 0x8, scoped, tag = 'scoped memory for tpu_custom_call.1']
    #allocation4 [shape = 's32[2]{0}', space=sflag, size = 0x8, scoped, tag = 'scoped memory for tpu_custom_call.1']
    #allocation5 [shape = 'u8[16384]{0}', space=vmem, size = 0x4000, scoped, tag = 'input window, operand 2']
    #allocation6 [shape = 's32[2]{0}', space=sflag, size = 0x8, scoped, tag = 'scoped memory for tpu_custom_call.1']
    #allocation7 [shape = 'u8[65536]{0}', space=vmem, size = 0x10000, scoped, tag = 'input window, operand 5, single buffered']
    #allocation8 [shape = 'u8[65536]{0}', space=vmem, size = 0x10000, scoped, tag = 'input window, operand 7, single buffered']
    #allocation9 [shape = 's32[1]{0}', space=sflag, size = 0x4, scoped, tag = 'scoped memory for tpu_custom_call.1']
    #allocation10 [shape = 'u8[65536]{0}', space=vmem, size = 0x10000, scoped, tag = 'input window, operand 9, single buffered']
    #allocation11 [shape = 'u8[65536]{0}', space=vmem, size = 0x10000, scoped, tag = 'input window, operand 11, single buffered']
    #allocation12 [shape = 's32[1]{0}', space=sflag, size = 0x4, scoped, tag = 'scoped memory for tpu_custom_call.1']
    #allocation13 [shape = 'u8[16384]{0}', space=vmem, size = 0x4000, scoped, tag = 'output window, operand 0']
    %18 = vsyncpa [#allocation3], 0
    %s19 = scalar_lea.sflag [#allocation3], 1
    %20 = vsyncpa %s19, 0
    %21 = vsyncpa [#allocation6], 0
    %s22 = scalar_lea.sflag [#allocation6], 1
    %23 = vsyncpa %s22, 0
    %24 = vsyncpa [#allocation9], 0
    %25 = vsyncpa [#allocation12], 0
    %26 = vsyncpa [#allocation4], 0
    %s27 = scalar_lea.sflag [#allocation4], 1
    %28 = vsyncpa %s27, 0
    loop: start=0, step=1, limit=4
    $region2: #{tpu_custom_call.1} parent=1 // loop_pre_header
      _
    $region3: #{tpu_custom_call.1} parent=1 // loop_header
      %s30 = sphi 0, %s34
      %p31 = scmp.ge.s32.totalorder %s30, 4
      %s40 = sphi 0, %s42
      %s43 = sphi 0, %s40
      %s44 = sphi 0, %s43
      %s60 = sphi 0, %s44
      %s66 = sphi 0, %s68
      %s69 = sphi 0, %s66
      %s70 = sphi 0, %s69
      %s86 = sphi 0, %s70
      %s92 = sphi 0, %s94
      %s95 = sphi 0, %s92
      %s96 = sphi 0, %s95
      %s112 = sphi 0, %s96
      %s118 = sphi 0, %s120
      %s121 = sphi 0, %s118
      %s122 = sphi 0, %s121
      %s138 = sphi 0, %s122
      %s144 = sphi 0, %s146
      %s147 = sphi 0, %s144
      %s148 = sphi 0, %s147
      %s164 = sphi 0, %s148
      %s168 = sphi 0, %s168
      %s170 = sphi 0, %s168
      %s171 = sphi 0, %s170
      %s185 = sphi 0, %s171
      %s189 = sphi 0, %s189
      %s191 = sphi 0, %s189
      %s192 = sphi 0, %s191
      %s206 = sphi 0, %s192
      %s210 = sphi 0, %s210
      %s212 = sphi 0, %s210
      %s213 = sphi 0, %s212
      %s227 = sphi 0, %s213
      %s231 = sphi 0, %s231
      %s233 = sphi 0, %s231
      %s234 = sphi 0, %s233
      %s248 = sphi 0, %s234
      %s252 = sphi 0, %s252
      %s254 = sphi 0, %s252
      %s255 = sphi 0, %s254
      %s269 = sphi 0, %s255
      %s273 = sphi 0, %s273
      %s275 = sphi 0, %s273
      %s276 = sphi 0, %s275
      %s290 = sphi 0, %s276
      %s294 = sphi 0, %s294
      %s296 = sphi 0, %s294
      %s297 = sphi 0, %s296
      %s311 = sphi 0, %s297
      %s315 = sphi 0, %s315
      %s317 = sphi 0, %s315
      %s318 = sphi 0, %s317
      %s332 = sphi 0, %s318
      %s338 = sphi 0, %s340
      %s341 = sphi 0, %s338
      %s342 = sphi 0, %s341
      %s358 = sphi 0, %s342
    $region4: #{tpu_custom_call.1} parent=1 // loop_header_branch
      %33 = sbr.rel (%p31) target = $region8
    $region5: #{tpu_custom_call.1} parent=1 // loop_body
      %s35 = ssub.s32 %s30, 1
      %s36 = ssub.s32 %s30, 2
      %s37 = sadd.s32 %s30, 1
      %s38 = ssub.s32 %s30, %s37
      %p39 = scmp.eq.s32.totalorder %s38, 0
      %s41 = sadd.s32 %s40, 1
      %s42 = scalar_select %p39, %s40, %s41
      %p45 = pneg %p39
      %p46 = scmp.eq.s32.totalorder %s30, 1
      %p47 = por %p45, %p46
      %p48 = scmp.ne.s32.totalorder %s40, %s43
      %p49 = scmp.eq.s32.totalorder %s30, 0
      %p50 = por %p48, %p49
      %p51 = scmp.ne.s32.totalorder %s40, %s43
      %p52 = scmp.eq.s32.totalorder %s35, 1
      %p53 = por %p51, %p52
      %p54 = scmp.ne.s32.totalorder %s43, %s44
      %p55 = scmp.eq.s32.totalorder %s35, 0
      %p56 = por %p54, %p55
      %p57 = scmp.ne.s32.totalorder %s43, %s44
      %p58 = scmp.eq.s32.totalorder %s36, 1
      %p59 = por %p57, %p58
      %p61 = scmp.ne.s32.totalorder %s44, %s60
      %p62 = scmp.eq.s32.totalorder %s36, 0
      %p63 = por %p61, %p62
      %s64 = ssub.s32 %s30, %s37
      %p65 = scmp.eq.s32.totalorder %s64, 0
      %s67 = sadd.s32 %s66, 1
      %s68 = scalar_select %p65, %s66, %s67
      %p71 = pneg %p65
      %p72 = scmp.eq.s32.totalorder %s30, 1
      %p73 = por %p71, %p72
      %p74 = scmp.ne.s32.totalorder %s66, %s69
      %p75 = scmp.eq.s32.totalorder %s30, 0
      %p76 = por %p74, %p75
      %p77 = scmp.ne.s32.totalorder %s66, %s69
      %p78 = scmp.eq.s32.totalorder %s35, 1
      %p79 = por %p77, %p78
      %p80 = scmp.ne.s32.totalorder %s69, %s70
      %p81 = scmp.eq.s32.totalorder %s35, 0
      %p82 = por %p80, %p81
      %p83 = scmp.ne.s32.totalorder %s69, %s70
      %p84 = scmp.eq.s32.totalorder %s36, 1
      %p85 = por %p83, %p84
      %p87 = scmp.ne.s32.totalorder %s70, %s86
      %p88 = scmp.eq.s32.totalorder %s36, 0
      %p89 = por %p87, %p88
      %s90 = ssub.s32 %s30, %s37
      %p91 = scmp.eq.s32.totalorder %s90, 0
      %s93 = sadd.s32 %s92, 1
      %s94 = scalar_select %p91, %s92, %s93
      %p97 = pneg %p91
      %p98 = scmp.eq.s32.totalorder %s30, 1
      %p99 = por %p97, %p98
      %p100 = scmp.ne.s32.totalorder %s92, %s95
      %p101 = scmp.eq.s32.totalorder %s30, 0
      %p102 = por %p100, %p101
      %p103 = scmp.ne.s32.totalorder %s92, %s95
      %p104 = scmp.eq.s32.totalorder %s35, 1
      %p105 = por %p103, %p104
      %p106 = scmp.ne.s32.totalorder %s95, %s96
      %p107 = scmp.eq.s32.totalorder %s35, 0
      %p108 = por %p106, %p107
      %p109 = scmp.ne.s32.totalorder %s95, %s96
      %p110 = scmp.eq.s32.totalorder %s36, 1
      %p111 = por %p109, %p110
      %p113 = scmp.ne.s32.totalorder %s96, %s112
      %p114 = scmp.eq.s32.totalorder %s36, 0
      %p115 = por %p113, %p114
      %s116 = ssub.s32 %s30, %s37
      %p117 = scmp.eq.s32.totalorder %s116, 0
      %s119 = sadd.s32 %s118, 1
      %s120 = scalar_select %p117, %s118, %s119
      %p123 = pneg %p117
      %p124 = scmp.eq.s32.totalorder %s30, 1
      %p125 = por %p123, %p124
      %p126 = scmp.ne.s32.totalorder %s118, %s121
      %p127 = scmp.eq.s32.totalorder %s30, 0
      %p128 = por %p126, %p127
      %p129 = scmp.ne.s32.totalorder %s118, %s121
      %p130 = scmp.eq.s32.totalorder %s35, 1
      %p131 = por %p129, %p130
      %p132 = scmp.ne.s32.totalorder %s121, %s122
      %p133 = scmp.eq.s32.totalorder %s35, 0
      %p134 = por %p132, %p133
      %p135 = scmp.ne.s32.totalorder %s121, %s122
      %p136 = scmp.eq.s32.totalorder %s36, 1
      %p137 = por %p135, %p136
      %p139 = scmp.ne.s32.totalorder %s122, %s138
      %p140 = scmp.eq.s32.totalorder %s36, 0
      %p141 = por %p139, %p140
      %s142 = ssub.s32 %s30, %s37
      %p143 = scmp.eq.s32.totalorder %s142, 0
      %s145 = sadd.s32 %s144, 1
      %s146 = scalar_select %p143, %s144, %s145
      %p149 = pneg %p143
      %p150 = scmp.eq.s32.totalorder %s30, 1
      %p151 = por %p149, %p150
      %p152 = scmp.ne.s32.totalorder %s144, %s147
      %p153 = scmp.eq.s32.totalorder %s30, 0
      %p154 = por %p152, %p153
      %p155 = scmp.ne.s32.totalorder %s144, %s147
      %p156 = scmp.eq.s32.totalorder %s35, 1
      %p157 = por %p155, %p156
      %p158 = scmp.ne.s32.totalorder %s147, %s148
      %p159 = scmp.eq.s32.totalorder %s35, 0
      %p160 = por %p158, %p159
      %p161 = scmp.ne.s32.totalorder %s147, %s148
      %p162 = scmp.eq.s32.totalorder %s36, 1
      %p163 = por %p161, %p162
      %p165 = scmp.ne.s32.totalorder %s148, %s164
      %p166 = scmp.eq.s32.totalorder %s36, 0
      %p167 = por %p165, %p166
      %s169 = sadd.s32 %s168, 1
      %p172 = scmp.eq.s32.totalorder %s30, 1
      %p173 = scmp.ne.s32.totalorder %s168, %s170
      %p174 = scmp.eq.s32.totalorder %s30, 0
      %p175 = por %p173, %p174
      %p176 = scmp.ne.s32.totalorder %s168, %s170
      %p177 = scmp.eq.s32.totalorder %s35, 1
      %p178 = por %p176, %p177
      %p179 = scmp.ne.s32.totalorder %s170, %s171
      %p180 = scmp.eq.s32.totalorder %s35, 0
      %p181 = por %p179, %p180
      %p182 = scmp.ne.s32.totalorder %s170, %s171
      %p183 = scmp.eq.s32.totalorder %s36, 1
      %p184 = por %p182, %p183
      %p186 = scmp.ne.s32.totalorder %s171, %s185
      %p187 = scmp.eq.s32.totalorder %s36, 0
      %p188 = por %p186, %p187
      %s190 = sadd.s32 %s189, 1
      %p193 = scmp.eq.s32.totalorder %s30, 1
      %p194 = scmp.ne.s32.totalorder %s189, %s191
      %p195 = scmp.eq.s32.totalorder %s30, 0
      %p196 = por %p194, %p195
      %p197 = scmp.ne.s32.totalorder %s189, %s191
      %p198 = scmp.eq.s32.totalorder %s35, 1
      %p199 = por %p197, %p198
      %p200 = scmp.ne.s32.totalorder %s191, %s192
      %p201 = scmp.eq.s32.totalorder %s35, 0
      %p202 = por %p200, %p201
      %p203 = scmp.ne.s32.totalorder %s191, %s192
      %p204 = scmp.eq.s32.totalorder %s36, 1
      %p205 = por %p203, %p204
      %p207 = scmp.ne.s32.totalorder %s192, %s206
      %p208 = scmp.eq.s32.totalorder %s36, 0
      %p209 = por %p207, %p208
      %s211 = sadd.s32 %s210, 1
      %p214 = scmp.eq.s32.totalorder %s30, 1
      %p215 = scmp.ne.s32.totalorder %s210, %s212
      %p216 = scmp.eq.s32.totalorder %s30, 0
      %p217 = por %p215, %p216
      %p218 = scmp.ne.s32.totalorder %s210, %s212
      %p219 = scmp.eq.s32.totalorder %s35, 1
      %p220 = por %p218, %p219
      %p221 = scmp.ne.s32.totalorder %s212, %s213
      %p222 = scmp.eq.s32.totalorder %s35, 0
      %p223 = por %p221, %p222
      %p224 = scmp.ne.s32.totalorder %s212, %s213
      %p225 = scmp.eq.s32.totalorder %s36, 1
      %p226 = por %p224, %p225
      %p228 = scmp.ne.s32.totalorder %s213, %s227
      %p229 = scmp.eq.s32.totalorder %s36, 0
      %p230 = por %p228, %p229
      %s232 = sadd.s32 %s231, 1
      %p235 = scmp.eq.s32.totalorder %s30, 1
      %p236 = scmp.ne.s32.totalorder %s231, %s233
      %p237 = scmp.eq.s32.totalorder %s30, 0
      %p238 = por %p236, %p237
      %p239 = scmp.ne.s32.totalorder %s231, %s233
      %p240 = scmp.eq.s32.totalorder %s35, 1
      %p241 = por %p239, %p240
      %p242 = scmp.ne.s32.totalorder %s233, %s234
      %p243 = scmp.eq.s32.totalorder %s35, 0
      %p244 = por %p242, %p243
      %p245 = scmp.ne.s32.totalorder %s233, %s234
      %p246 = scmp.eq.s32.totalorder %s36, 1
      %p247 = por %p245, %p246
      %p249 = scmp.ne.s32.totalorder %s234, %s248
      %p250 = scmp.eq.s32.totalorder %s36, 0
      %p251 = por %p249, %p250
      %s253 = sadd.s32 %s252, 1
      %p256 = scmp.eq.s32.totalorder %s30, 1
      %p257 = scmp.ne.s32.totalorder %s252, %s254
      %p258 = scmp.eq.s32.totalorder %s30, 0
      %p259 = por %p257, %p258
      %p260 = scmp.ne.s32.totalorder %s252, %s254
      %p261 = scmp.eq.s32.totalorder %s35, 1
      %p262 = por %p260, %p261
      %p263 = scmp.ne.s32.totalorder %s254, %s255
      %p264 = scmp.eq.s32.totalorder %s35, 0
      %p265 = por %p263, %p264
      %p266 = scmp.ne.s32.totalorder %s254, %s255
      %p267 = scmp.eq.s32.totalorder %s36, 1
      %p268 = por %p266, %p267
      %p270 = scmp.ne.s32.totalorder %s255, %s269
      %p271 = scmp.eq.s32.totalorder %s36, 0
      %p272 = por %p270, %p271
      %s274 = sadd.s32 %s273, 1
      %p277 = scmp.eq.s32.totalorder %s30, 1
      %p278 = scmp.ne.s32.totalorder %s273, %s275
      %p279 = scmp.eq.s32.totalorder %s30, 0
      %p280 = por %p278, %p279
      %p281 = scmp.ne.s32.totalorder %s273, %s275
      %p282 = scmp.eq.s32.totalorder %s35, 1
      %p283 = por %p281, %p282
      %p284 = scmp.ne.s32.totalorder %s275, %s276
      %p285 = scmp.eq.s32.totalorder %s35, 0
      %p286 = por %p284, %p285
      %p287 = scmp.ne.s32.totalorder %s275, %s276
      %p288 = scmp.eq.s32.totalorder %s36, 1
      %p289 = por %p287, %p288
      %p291 = scmp.ne.s32.totalorder %s276, %s290
      %p292 = scmp.eq.s32.totalorder %s36, 0
      %p293 = por %p291, %p292
      %s295 = sadd.s32 %s294, 1
      %p298 = scmp.eq.s32.totalorder %s30, 1
      %p299 = scmp.ne.s32.totalorder %s294, %s296
      %p300 = scmp.eq.s32.totalorder %s30, 0
      %p301 = por %p299, %p300
      %p302 = scmp.ne.s32.totalorder %s294, %s296
      %p303 = scmp.eq.s32.totalorder %s35, 1
      %p304 = por %p302, %p303
      %p305 = scmp.ne.s32.totalorder %s296, %s297
      %p306 = scmp.eq.s32.totalorder %s35, 0
      %p307 = por %p305, %p306
      %p308 = scmp.ne.s32.totalorder %s296, %s297
      %p309 = scmp.eq.s32.totalorder %s36, 1
      %p310 = por %p308, %p309
      %p312 = scmp.ne.s32.totalorder %s297, %s311
      %p313 = scmp.eq.s32.totalorder %s36, 0
      %p314 = por %p312, %p313
      %s316 = sadd.s32 %s315, 1
      %p319 = scmp.eq.s32.totalorder %s30, 1
      %p320 = scmp.ne.s32.totalorder %s315, %s317
      %p321 = scmp.eq.s32.totalorder %s30, 0
      %p322 = por %p320, %p321
      %p323 = scmp.ne.s32.totalorder %s315, %s317
      %p324 = scmp.eq.s32.totalorder %s35, 1
      %p325 = por %p323, %p324
      %p326 = scmp.ne.s32.totalorder %s317, %s318
      %p327 = scmp.eq.s32.totalorder %s35, 0
      %p328 = por %p326, %p327
      %p329 = scmp.ne.s32.totalorder %s317, %s318
      %p330 = scmp.eq.s32.totalorder %s36, 1
      %p331 = por %p329, %p330
      %p333 = scmp.ne.s32.totalorder %s318, %s332
      %p334 = scmp.eq.s32.totalorder %s36, 0
      %p335 = por %p333, %p334
      %s336 = ssub.s32 %s30, %s37
      %p337 = scmp.eq.s32.totalorder %s336, 0
      %s339 = sadd.s32 %s338, 1
      %s340 = scalar_select %p337, %s338, %s339
      %p343 = pneg %p337
      %p344 = scmp.eq.s32.totalorder %s30, 1
      %p345 = por %p343, %p344
      %p346 = scmp.ne.s32.totalorder %s338, %s341
      %p347 = scmp.eq.s32.totalorder %s30, 0
      %p348 = por %p346, %p347
      %p349 = scmp.ne.s32.totalorder %s338, %s341
      %p350 = scmp.eq.s32.totalorder %s35, 1
      %p351 = por %p349, %p350
      %p352 = scmp.ne.s32.totalorder %s341, %s342
      %p353 = scmp.eq.s32.totalorder %s35, 0
      %p354 = por %p352, %p353
      %p355 = scmp.ne.s32.totalorder %s341, %s342
      %p356 = scmp.eq.s32.totalorder %s36, 1
      %p357 = por %p355, %p356
      %p359 = scmp.ne.s32.totalorder %s342, %s358
      %p360 = scmp.eq.s32.totalorder %s36, 0
      %p361 = por %p359, %p360
      %p362 = scmp.le.s32.totalorder 1, %s30
      %p363 = scmp.lt.s32.totalorder %s30, 3
      %p364 = pnand %p362, %p363
      %p365 = pneg %p364
      // Predicated region
      $region9: #{tpu_custom_call.1} parent=5 // pred_check
        _
      $region10: #{tpu_custom_call.1} parent=5 // pred_check_branch
        %367 = sbr.rel (%p364) target = $region12
      $region11: #{tpu_custom_call.1} parent=5 // pred_region
        %s368 = ssub.s32 %s30, 1
        // Predicated region
        $region13: #{tpu_custom_call.1} parent=11 // pred_check
          %p369 = pneg %p181
        $region14: #{tpu_custom_call.1} parent=11 // pred_check_branch
          %371 = sbr.rel (%p369) target = $region16
        $region15: #{tpu_custom_call.1} parent=11 // pred_region
          %s373 = ssub.s32 2048, 2048
          %374 = vsyncadd [#allocation6], %s373
          %s375 = sshll.u32 [#allocation7], 4
          %s376 = int_to_ptr.vmem [resolvable:$true] %s375
          %381 = dma.hbm_to_vmem [thread:$0]  %s5, 2048, %s376, [#allocation6], 128, 128, 8
        $region16: #{tpu_custom_call.1} parent=11 // pred_fallthru
          _
        // Predicated region
        $region17: #{tpu_custom_call.1} parent=11 // pred_check
          %p382 = pneg %p202
        $region18: #{tpu_custom_call.1} parent=11 // pred_check_branch
          %384 = sbr.rel (%p382) target = $region20
        $region19: #{tpu_custom_call.1} parent=11 // pred_region
          _
        $region20: #{tpu_custom_call.1} parent=11 // pred_fallthru
          _
        // Predicated region
        $region21: #{tpu_custom_call.1} parent=11 // pred_check
          %p385 = pneg %p223
        $region22: #{tpu_custom_call.1} parent=11 // pred_check_branch
          %387 = sbr.rel (%p385) target = $region24
        $region23: #{tpu_custom_call.1} parent=11 // pred_region
          %s389 = ssub.s32 2048, 2048
          %390 = vsyncadd [#allocation9], %s389
          %s391 = sshll.u32 [#allocation8], 4
          %s392 = int_to_ptr.vmem [resolvable:$true] %s391
          %397 = dma.hbm_to_vmem [thread:$0]  %s7, 2048, %s392, [#allocation9], 128, 128, 8
        $region24: #{tpu_custom_call.1} parent=11 // pred_fallthru
          _
        // Predicated region
        $region25: #{tpu_custom_call.1} parent=11 // pred_check
          %p398 = pneg %p244
        $region26: #{tpu_custom_call.1} parent=11 // pred_check_branch
          %400 = sbr.rel (%p398) target = $region28
        $region27: #{tpu_custom_call.1} parent=11 // pred_region
          _
        $region28: #{tpu_custom_call.1} parent=11 // pred_fallthru
          _
        // Predicated region
        $region29: #{tpu_custom_call.1} parent=11 // pred_check
          %p401 = pneg %p265
        $region30: #{tpu_custom_call.1} parent=11 // pred_check_branch
          %403 = sbr.rel (%p401) target = $region32
        $region31: #{tpu_custom_call.1} parent=11 // pred_region
          %s405 = ssub.s32 2048, 2048
          %406 = vsyncadd [#allocation9], %s405
          %s407 = sshll.u32 [#allocation10], 4
          %s408 = int_to_ptr.vmem [resolvable:$true] %s407
          %413 = dma.hbm_to_vmem [thread:$0]  %s9, 2048, %s408, [#allocation9], 128, 128, 8
        $region32: #{tpu_custom_call.1} parent=11 // pred_fallthru
          _
        // Predicated region
        $region33: #{tpu_custom_call.1} parent=11 // pred_check
          %p414 = pneg %p286
        $region34: #{tpu_custom_call.1} parent=11 // pred_check_branch
          %416 = sbr.rel (%p414) target = $region36
        $region35: #{tpu_custom_call.1} parent=11 // pred_region
          _
        $region36: #{tpu_custom_call.1} parent=11 // pred_fallthru
          _
        // Predicated region
        $region37: #{tpu_custom_call.1} parent=11 // pred_check
          %p417 = pneg %p307
        $region38: #{tpu_custom_call.1} parent=11 // pred_check_branch
          %419 = sbr.rel (%p417) target = $region40
        $region39: #{tpu_custom_call.1} parent=11 // pred_region
          %s421 = ssub.s32 2048, 2048
          %422 = vsyncadd [#allocation12], %s421
          %s423 = sshll.u32 [#allocation11], 4
          %s424 = int_to_ptr.vmem [resolvable:$true] %s423
          %429 = dma.hbm_to_vmem [thread:$0]  %s11, 2048, %s424, [#allocation12], 128, 128, 8
        $region40: #{tpu_custom_call.1} parent=11 // pred_fallthru
          _
        // Predicated region
        $region41: #{tpu_custom_call.1} parent=11 // pred_check
          %p430 = pneg %p328
        $region42: #{tpu_custom_call.1} parent=11 // pred_check_branch
          %432 = sbr.rel (%p430) target = $region44
        $region43: #{tpu_custom_call.1} parent=11 // pred_region
          _
        $region44: #{tpu_custom_call.1} parent=11 // pred_fallthru
          _
      $region12: #{tpu_custom_call.1} parent=5 // pred_fallthru
        _
      %p433 = scmp.lt.s32.totalorder %s30, 2
      // Predicated region
      $region45: #{tpu_custom_call.1} parent=5 // pred_check
        %p434 = pneg %p433
      $region46: #{tpu_custom_call.1} parent=5 // pred_check_branch
        %436 = sbr.rel (%p434) target = $region48
      $region47: #{tpu_custom_call.1} parent=5 // pred_region
        // Predicated region
        $region49: #{tpu_custom_call.1} parent=47 // pred_check
          %p437 = pneg %p50
        $region50: #{tpu_custom_call.1} parent=47 // pred_check_branch
          %439 = sbr.rel (%p437) target = $region52
        $region51: #{tpu_custom_call.1} parent=47 // pred_region
          %p440 = scmp.lt.s32.totalorder %s30, 1
          %s441 = scalar_select %p440, %s30, 1
          %s442 = smul.addr %s441, 2
          %s443 = smul.addr %s442, 8
          %s444 = scalar_lea.vmem %s0, %s443
        $region52: #{tpu_custom_call.1} parent=47 // pred_fallthru
          _
        // Predicated region
        $region53: #{tpu_custom_call.1} parent=47 // pred_check
          %p445 = pneg %p76
        $region54: #{tpu_custom_call.1} parent=47 // pred_check_branch
          %447 = sbr.rel (%p445) target = $region56
        $region55: #{tpu_custom_call.1} parent=47 // pred_region
          %s448 = sand.u32 %s66, 1
          %s449 = scalar_lea.sflag [#allocation3], %s448
          %s450 = sand.u32 %s66, 1
          %s451 = smul.addr %s450, 16
          %s452 = scalar_lea.vmem [#allocation2], %s451
          %s454 = ssub.s32 256, 256
          %455 = vsyncadd %s449, %s454
          %s456 = smul.addr %s30, 2
          %s457 = smul.addr %s456, 128
          %s458 = scalar_lea.hbm %s1, %s457
          %s459 = sshll.u32 %s452, 4
          %s460 = int_to_ptr.vmem [resolvable:$true] %s459
          %465 = dma.hbm_to_vmem [thread:$0]  %s458, 256, %s460, %s449, 128, 128, 8
        $region56: #{tpu_custom_call.1} parent=47 // pred_fallthru
          _
        // Predicated region
        $region57: #{tpu_custom_call.1} parent=47 // pred_check
          %p466 = pneg %p102
        $region58: #{tpu_custom_call.1} parent=47 // pred_check_branch
          %468 = sbr.rel (%p466) target = $region60
        $region59: #{tpu_custom_call.1} parent=47 // pred_region
          %s469 = sand.u32 %s30, 1
          %s470 = scalar_lea.sflag [#allocation6], %s469
          %s471 = sand.u32 %s92, 1
          %s472 = smul.addr %s471, 16
          %s473 = scalar_lea.vmem [#allocation5], %s472
          %s475 = ssub.s32 256, 256
          %476 = vsyncadd %s470, %s475
          %s477 = smul.addr %s30, 2
          %s478 = smul.addr %s477, 128
          %s479 = scalar_lea.hbm %s2, %s478
          %s480 = sshll.u32 %s473, 4
          %s481 = int_to_ptr.vmem [resolvable:$true] %s480
          %486 = dma.hbm_to_vmem [thread:$0]  %s479, 256, %s481, %s470, 128, 128, 8
        $region60: #{tpu_custom_call.1} parent=47 // pred_fallthru
          _
        // Predicated region
        $region61: #{tpu_custom_call.1} parent=47 // pred_check
          %p487 = pneg %p128
        $region62: #{tpu_custom_call.1} parent=47 // pred_check_branch
          %489 = sbr.rel (%p487) target = $region64
        $region63: #{tpu_custom_call.1} parent=47 // pred_region
          %p490 = scmp.lt.s32.totalorder %s30, 1
          %s491 = scalar_select %p490, %s30, 1
          %s492 = scalar_lea.vmem %s3, %s491
        $region64: #{tpu_custom_call.1} parent=47 // pred_fallthru
          _
        // Predicated region
        $region65: #{tpu_custom_call.1} parent=47 // pred_check
          %p493 = pneg %p154
        $region66: #{tpu_custom_call.1} parent=47 // pred_check_branch
          %495 = sbr.rel (%p493) target = $region68
        $region67: #{tpu_custom_call.1} parent=47 // pred_region
          %p496 = scmp.lt.s32.totalorder %s30, 1
          %s497 = scalar_select %p496, %s30, 1
          %s498 = smul.addr %s497, 2
          %s499 = smul.addr %s498, 8
          %s500 = scalar_lea.vmem %s4, %s499
        $region68: #{tpu_custom_call.1} parent=47 // pred_fallthru
          _
      $region48: #{tpu_custom_call.1} parent=5 // pred_fallthru
        _
      %p501 = scmp.le.s32.totalorder 1, %s30
      %p502 = scmp.lt.s32.totalorder %s30, 3
      %p503 = pnand %p501, %p502
      %p504 = pneg %p503
      // Predicated region
      $region69: #{tpu_custom_call.1} parent=5 // pred_check
        _
      $region70: #{tpu_custom_call.1} parent=5 // pred_check_branch
        %506 = sbr.rel (%p503) target = $region72
      $region71: #{tpu_custom_call.1} parent=5 // pred_region
        %s507 = ssub.s32 %s30, 1
        %s508 = sand.u32 %s69, 1
        %s509 = scalar_lea.sflag [#allocation3], %s508
        %s510 = sand.u32 %s69, 1
        %s511 = smul.addr %s510, 16
        %s512 = scalar_lea.vmem [#allocation2], %s511
        // Predicated region
        $region73: #{tpu_custom_call.1} parent=71 // pred_check
          %p513 = pneg %p82
        $region74: #{tpu_custom_call.1} parent=71 // pred_check_branch
          %515 = sbr.rel (%p513) target = $region76
        $region75: #{tpu_custom_call.1} parent=71 // pred_region
          %516 = dma.done %s509, 256
        $region76: #{tpu_custom_call.1} parent=71 // pred_fallthru
          _
        %s517 = sand.u32 %s35, 1
        %s518 = scalar_lea.sflag [#allocation6], %s517
        %s519 = sand.u32 %s95, 1
        %s520 = smul.addr %s519, 16
        %s521 = scalar_lea.vmem [#allocation5], %s520
        // Predicated region
        $region77: #{tpu_custom_call.1} parent=71 // pred_check
          %p522 = pneg %p108
        $region78: #{tpu_custom_call.1} parent=71 // pred_check_branch
          %524 = sbr.rel (%p522) target = $region80
        $region79: #{tpu_custom_call.1} parent=71 // pred_region
          %525 = dma.done %s518, 256
        $region80: #{tpu_custom_call.1} parent=71 // pred_fallthru
          _
        // Predicated region
        $region81: #{tpu_custom_call.1} parent=71 // pred_check
          %p526 = pneg %p181
        $region82: #{tpu_custom_call.1} parent=71 // pred_check_branch
          %528 = sbr.rel (%p526) target = $region84
        $region83: #{tpu_custom_call.1} parent=71 // pred_region
          %529 = dma.done [#allocation6], 2048
        $region84: #{tpu_custom_call.1} parent=71 // pred_fallthru
          _
        // Predicated region
        $region85: #{tpu_custom_call.1} parent=71 // pred_check
          %p530 = pneg %p223
        $region86: #{tpu_custom_call.1} parent=71 // pred_check_branch
          %532 = sbr.rel (%p530) target = $region88
        $region87: #{tpu_custom_call.1} parent=71 // pred_region
          %533 = dma.done [#allocation9], 2048
        $region88: #{tpu_custom_call.1} parent=71 // pred_fallthru
          _
        // Predicated region
        $region89: #{tpu_custom_call.1} parent=71 // pred_check
          %p534 = pneg %p265
        $region90: #{tpu_custom_call.1} parent=71 // pred_check_branch
          %536 = sbr.rel (%p534) target = $region92
        $region91: #{tpu_custom_call.1} parent=71 // pred_region
          %537 = dma.done [#allocation9], 2048
        $region92: #{tpu_custom_call.1} parent=71 // pred_fallthru
          _
        // Predicated region
        $region93: #{tpu_custom_call.1} parent=71 // pred_check
          %p538 = pneg %p307
        $region94: #{tpu_custom_call.1} parent=71 // pred_check_branch
          %540 = sbr.rel (%p538) target = $region96
        $region95: #{tpu_custom_call.1} parent=71 // pred_region
          %541 = dma.done [#allocation12], 2048
        $region96: #{tpu_custom_call.1} parent=71 // pred_fallthru
          _
        %p542 = scmp.lt.s32.totalorder %s35, 1
        %s543 = scalar_select %p542, %s35, 1
        %s544 = smul.addr %s543, 2
        %s545 = smul.addr %s544, 8
        %s546 = scalar_lea.vmem %s0, %s545
        %p547 = pneg %p56
        %p548 = pneg %p53
        %s549 = sand.u32 %s69, 1
        %s550 = scalar_lea.sflag [#allocation3], %s549
        %s551 = sand.u32 %s69, 1
        %s552 = smul.addr %s551, 16
        %s553 = scalar_lea.vmem [#allocation2], %s552
        %p554 = pneg %p82
        %p555 = pneg %p79
        %s556 = sand.u32 %s35, 1
        %s557 = scalar_lea.sflag [#allocation6], %s556
        %s558 = sand.u32 %s95, 1
        %s559 = smul.addr %s558, 16
        %s560 = scalar_lea.vmem [#allocation5], %s559
        %p561 = pneg %p108
        %p562 = pneg %p105
        %p563 = scmp.lt.s32.totalorder %s35, 1
        %s564 = scalar_select %p563, %s35, 1
        %s565 = scalar_lea.vmem %s3, %s564
        %p566 = pneg %p134
        %p567 = pneg %p131
        %p568 = scmp.lt.s32.totalorder %s35, 1
        %s569 = scalar_select %p568, %s35, 1
        %s570 = smul.addr %s569, 2
        %s571 = smul.addr %s570, 8
        %s572 = scalar_lea.vmem %s4, %s571
        %p573 = pneg %p160
        %p574 = pneg %p157
        %p575 = pneg %p181
        %p576 = pneg %p178
        %p577 = pneg %p202
        %p578 = pneg %p199
        %p579 = pneg %p223
        %p580 = pneg %p220
        %p581 = pneg %p244
        %p582 = pneg %p241
        %p583 = pneg %p265
        %p584 = pneg %p262
        %p585 = pneg %p286
        %p586 = pneg %p283
        %p587 = pneg %p307
        %p588 = pneg %p304
        %p589 = pneg %p328
        %p590 = pneg %p325
        %p591 = pneg %p354
        %p592 = pneg %p351
        %s593 = sand.u32 %s341, 1
        %s594 = scalar_lea.sflag [#allocation4], %s593
        %s595 = sand.u32 %s341, 1
        %s596 = smul.addr %s595, 16
        %s597 = scalar_lea.vmem [#allocation13], %s596
        %p598 = scmp.lt.s32.totalorder %s35, 1
        %s599 = scalar_select %p598, %s35, 1
        %s600 = smul.addr %s599, 2
        %s601 = smul.addr %s600, 8
        %s602 = scalar_lea.vmem %s0, %s601
        %p603 = scmp.lt.s32.totalorder %s35, 1
        %s604 = scalar_select %p603, %s35, 1
        %s605 = scalar_lea.vmem %s3, %s604
        %p606 = scmp.lt.s32.totalorder %s35, 1
        %s607 = scalar_select %p606, %s35, 1
        %s608 = smul.addr %s607, 2
        %s609 = smul.addr %s608, 8
        %s610 = scalar_lea.vmem %s4, %s609
        %v611 = vld [vmem:[%s602] sm:$0xff]
        %v612 = vld [vmem:[%s602 + $0x8] sm:$0xff]
        %v613 = vld [vmem:[%s512] sm:$0xff]
        %v614 = vld [vmem:[%s512 + $0x8] sm:$0xff]
        %v615 = vld [vmem:[%s521] sm:$0xff]
        %v616 = vld [vmem:[%s521 + $0x8] sm:$0xff]
        %v617 = vld [vmem:[%s605] sm:$0x1]
        %v618 = vld [vmem:[#allocation7] sm:$0xff]
        %v619 = vld [vmem:[#allocation7 + $0x8] sm:$0xff]
        %v620 = vld [vmem:[#allocation7 + $0x10] sm:$0xff]
        %v621 = vld [vmem:[#allocation7 + $0x18] sm:$0xff]
        %v622 = vld [vmem:[#allocation7 + $0x20] sm:$0xff]
        %v623 = vld [vmem:[#allocation7 + $0x28] sm:$0xff]
        %v624 = vld [vmem:[#allocation7 + $0x30] sm:$0xff]
        %v625 = vld [vmem:[#allocation7 + $0x38] sm:$0xff]
        %v626 = vld [vmem:[#allocation7 + $0x40] sm:$0xff]
        %v627 = vld [vmem:[#allocation7 + $0x48] sm:$0xff]
        %v628 = vld [vmem:[#allocation7 + $0x50] sm:$0xff]
        %v629 = vld [vmem:[#allocation7 + $0x58] sm:$0xff]
        %v630 = vld [vmem:[#allocation7 + $0x60] sm:$0xff]
        %v631 = vld [vmem:[#allocation7 + $0x68] sm:$0xff]
        %v632 = vld [vmem:[#allocation7 + $0x70] sm:$0xff]
        %v633 = vld [vmem:[#allocation7 + $0x78] sm:$0xff]
        %v634 = vld [vmem:[%s6] sm:$0x1]
        %v636 = vlaneseq
        %v637 = vshrl.u32 %v636, 7
        %v638 = vsub.s32 0, %v637
        %v639 = vrot.slane %v634, %v638
        %641 = vmatprep.subr.mxu0 0.0
        %642 = vmatpush1.msra.mxu0 %v618
        %643 = vmatprep.subr.mxu0 0.0
        %644 = vmatpush1.msra.mxu0 %v619
        %645 = vmatprep.subr.mxu0 0.0
        %646 = vmatpush1.msra.mxu0 %v620
        %647 = vmatprep.subr.mxu0 0.0
        %648 = vmatpush1.msra.mxu0 %v621
        %649 = vmatprep.subr.mxu0 0.0
        %650 = vmatpush1.msra.mxu0 %v622
        %651 = vmatprep.subr.mxu0 0.0
        %652 = vmatpush1.msra.mxu0 %v623
        %653 = vmatprep.subr.mxu0 0.0
        %654 = vmatpush1.msra.mxu0 %v624
        %655 = vmatprep.subr.mxu0 0.0
        %656 = vmatpush1.msra.mxu0 %v625
        %657 = vmatprep.subr.mxu0 0.0
        %658 = vmatpush1.msra.mxu0 %v626
        %659 = vmatprep.subr.mxu0 0.0
        %660 = vmatpush1.msra.mxu0 %v627
        %661 = vmatprep.subr.mxu0 0.0
        %662 = vmatpush1.msra.mxu0 %v628
        %663 = vmatprep.subr.mxu0 0.0
        %664 = vmatpush1.msra.mxu0 %v629
        %665 = vmatprep.subr.mxu0 0.0
        %666 = vmatpush1.msra.mxu0 %v630
        %667 = vmatprep.subr.mxu0 0.0
        %668 = vmatpush1.msra.mxu0 %v631
        %669 = vmatprep.subr.mxu0 0.0
        %670 = vmatpush1.msra.mxu0 %v632
        %671 = vmatprep.subr.mxu0 0.0
        %672 = vmatpush1.msra.mxu0 %v633
        %673 = vmatprep.subr.mxu0 0.0
        %674 = vmatpush1.msra.mxu0 0.0
        %675 = vmatprep.subr.mxu0 0.0
        %676 = vmatpush1.msra.mxu0 0.0
        %677 = vmatprep.subr.mxu0 0.0
        %678 = vmatpush1.msra.mxu0 0.0
        %679 = vmatprep.subr.mxu0 0.0
        %680 = vmatpush1.msra.mxu0 0.0
        %681 = vmatprep.subr.mxu0 0.0
        %682 = vmatpush1.msra.mxu0 0.0
        %683 = vmatprep.subr.mxu0 0.0
        %684 = vmatpush1.msra.mxu0 0.0
        %685 = vmatprep.subr.mxu0 0.0
        %686 = vmatpush1.msra.mxu0 0.0
        %687 = vmatprep.subr.mxu0 0.0
        %688 = vmatpush1.msra.mxu0 0.0
        %689 = vmatprep.subr.mxu0 0.0
        %690 = vmatpush1.msra.mxu0 0.0
        %691 = vmatprep.subr.mxu0 0.0
        %692 = vmatpush1.msra.mxu0 0.0
        %693 = vmatprep.subr.mxu0 0.0
        %694 = vmatpush1.msra.mxu0 0.0
        %695 = vmatprep.subr.mxu0 0.0
        %696 = vmatpush1.msra.mxu0 0.0
        %697 = vmatprep.subr.mxu0 0.0
        %698 = vmatpush1.msra.mxu0 0.0
        %699 = vmatprep.subr.mxu0 0.0
        %700 = vmatpush1.msra.mxu0 0.0
        %701 = vmatprep.subr.mxu0 0.0
        %702 = vmatpush1.msra.mxu0 0.0
        %703 = vmatprep.subr.mxu0 0.0
        %704 = vmatpush1.msra.mxu0 0.0
        %705 = vmatprep.mubr.f32.mxu0 0.0
        %706 = vmatmul.mubr.f32.gmra.mrb[0].mxu0 %v611
        %v707 = vpop.f32.mrb[0].mxu0
        %v708 = vadd.f32 %v639, %v707
        %v709 = vpop.f32.mrb[0].mxu0
        %710 = vmatprep.mubr.f32.mxu0 0.0
        %711 = vmatmul.mubr.f32.gmra.mrb[0].mxu0 %v612
        %v712 = vpop.f32.mrb[0].mxu0
        %v713 = vadd.f32 %v639, %v712
        %v714 = vpop.f32.mrb[0].mxu0
        %715 = vdwg.mxu0
        %v716 = vld [vmem:[#allocation8] sm:$0xff]
        %v717 = vld [vmem:[#allocation8 + $0x8] sm:$0xff]
        %v718 = vld [vmem:[#allocation8 + $0x10] sm:$0xff]
        %v719 = vld [vmem:[#allocation8 + $0x18] sm:$0xff]
        %v720 = vld [vmem:[#allocation8 + $0x20] sm:$0xff]
        %v721 = vld [vmem:[#allocation8 + $0x28] sm:$0xff]
        %v722 = vld [vmem:[#allocation8 + $0x30] sm:$0xff]
        %v723 = vld [vmem:[#allocation8 + $0x38] sm:$0xff]
        %v724 = vld [vmem:[#allocation8 + $0x40] sm:$0xff]
        %v725 = vld [vmem:[#allocation8 + $0x48] sm:$0xff]
        %v726 = vld [vmem:[#allocation8 + $0x50] sm:$0xff]
        %v727 = vld [vmem:[#allocation8 + $0x58] sm:$0xff]
        %v728 = vld [vmem:[#allocation8 + $0x60] sm:$0xff]
        %v729 = vld [vmem:[#allocation8 + $0x68] sm:$0xff]
        %v730 = vld [vmem:[#allocation8 + $0x70] sm:$0xff]
        %v731 = vld [vmem:[#allocation8 + $0x78] sm:$0xff]
        %v732 = vld [vmem:[%s8] sm:$0x1]
        %v734 = vlaneseq
        %v735 = vshrl.u32 %v734, 7
        %v736 = vsub.s32 0, %v735
        %v737 = vrot.slane %v732, %v736
        %739 = vmatprep.subr.mxu0 0.0
        %740 = vmatpush1.msra.mxu0 %v716
        %741 = vmatprep.subr.mxu0 0.0
        %742 = vmatpush1.msra.mxu0 %v717
        %743 = vmatprep.subr.mxu0 0.0
        %744 = vmatpush1.msra.mxu0 %v718
        %745 = vmatprep.subr.mxu0 0.0
        %746 = vmatpush1.msra.mxu0 %v719
        %747 = vmatprep.subr.mxu0 0.0
        %748 = vmatpush1.msra.mxu0 %v720
        %749 = vmatprep.subr.mxu0 0.0
        %750 = vmatpush1.msra.mxu0 %v721
        %751 = vmatprep.subr.mxu0 0.0
        %752 = vmatpush1.msra.mxu0 %v722
        %753 = vmatprep.subr.mxu0 0.0
        %754 = vmatpush1.msra.mxu0 %v723
        %755 = vmatprep.subr.mxu0 0.0
        %756 = vmatpush1.msra.mxu0 %v724
        %757 = vmatprep.subr.mxu0 0.0
        %758 = vmatpush1.msra.mxu0 %v725
        %759 = vmatprep.subr.mxu0 0.0
        %760 = vmatpush1.msra.mxu0 %v726
        %761 = vmatprep.subr.mxu0 0.0
        %762 = vmatpush1.msra.mxu0 %v727
        %763 = vmatprep.subr.mxu0 0.0
        %764 = vmatpush1.msra.mxu0 %v728
        %765 = vmatprep.subr.mxu0 0.0
        %766 = vmatpush1.msra.mxu0 %v729
        %767 = vmatprep.subr.mxu0 0.0
        %768 = vmatpush1.msra.mxu0 %v730
        %769 = vmatprep.subr.mxu0 0.0
        %770 = vmatpush1.msra.mxu0 %v731
        %771 = vmatprep.subr.mxu0 0.0
        %772 = vmatpush1.msra.mxu0 0.0
        %773 = vmatprep.subr.mxu0 0.0
        %774 = vmatpush1.msra.mxu0 0.0
        %775 = vmatprep.subr.mxu0 0.0
        %776 = vmatpush1.msra.mxu0 0.0
        %777 = vmatprep.subr.mxu0 0.0
        %778 = vmatpush1.msra.mxu0 0.0
        %779 = vmatprep.subr.mxu0 0.0
        %780 = vmatpush1.msra.mxu0 0.0
        %781 = vmatprep.subr.mxu0 0.0
        %782 = vmatpush1.msra.mxu0 0.0
        %783 = vmatprep.subr.mxu0 0.0
        %784 = vmatpush1.msra.mxu0 0.0
        %785 = vmatprep.subr.mxu0 0.0
        %786 = vmatpush1.msra.mxu0 0.0
        %787 = vmatprep.subr.mxu0 0.0
        %788 = vmatpush1.msra.mxu0 0.0
        %789 = vmatprep.subr.mxu0 0.0
        %790 = vmatpush1.msra.mxu0 0.0
        %791 = vmatprep.subr.mxu0 0.0
        %792 = vmatpush1.msra.mxu0 0.0
        %793 = vmatprep.subr.mxu0 0.0
        %794 = vmatpush1.msra.mxu0 0.0
        %795 = vmatprep.subr.mxu0 0.0
        %796 = vmatpush1.msra.mxu0 0.0
        %797 = vmatprep.subr.mxu0 0.0
        %798 = vmatpush1.msra.mxu0 0.0
        %799 = vmatprep.subr.mxu0 0.0
        %800 = vmatpush1.msra.mxu0 0.0
        %801 = vmatprep.subr.mxu0 0.0
        %802 = vmatpush1.msra.mxu0 0.0
        %803 = vmatprep.mubr.f32.mxu0 0.0
        %804 = vmatmul.mubr.f32.gmra.mrb[0].mxu0 %v613
        %v805 = vpop.f32.mrb[0].mxu0
        %v806 = vadd.f32 %v737, %v805
        %v807 = vpop.f32.mrb[0].mxu0
        %808 = vmatprep.mubr.f32.mxu0 0.0
        %809 = vmatmul.mubr.f32.gmra.mrb[0].mxu0 %v614
        %v810 = vpop.f32.mrb[0].mxu0
        %v811 = vadd.f32 %v737, %v810
        %v812 = vpop.f32.mrb[0].mxu0
        %813 = vdwg.mxu0
        %v814 = vld [vmem:[#allocation10] sm:$0xff]
        %v815 = vld [vmem:[#allocation10 + $0x8] sm:$0xff]
        %v816 = vld [vmem:[#allocation10 + $0x10] sm:$0xff]
        %v817 = vld [vmem:[#allocation10 + $0x18] sm:$0xff]
        %v818 = vld [vmem:[#allocation10 + $0x20] sm:$0xff]
        %v819 = vld [vmem:[#allocation10 + $0x28] sm:$0xff]
        %v820 = vld [vmem:[#allocation10 + $0x30] sm:$0xff]
        %v821 = vld [vmem:[#allocation10 + $0x38] sm:$0xff]
        %v822 = vld [vmem:[#allocation10 + $0x40] sm:$0xff]
        %v823 = vld [vmem:[#allocation10 + $0x48] sm:$0xff]
        %v824 = vld [vmem:[#allocation10 + $0x50] sm:$0xff]
        %v825 = vld [vmem:[#allocation10 + $0x58] sm:$0xff]
        %v826 = vld [vmem:[#allocation10 + $0x60] sm:$0xff]
        %v827 = vld [vmem:[#allocation10 + $0x68] sm:$0xff]
        %v828 = vld [vmem:[#allocation10 + $0x70] sm:$0xff]
        %v829 = vld [vmem:[#allocation10 + $0x78] sm:$0xff]
        %v830 = vld [vmem:[%s10] sm:$0x1]
        %v832 = vlaneseq
        %v833 = vshrl.u32 %v832, 7
        %v834 = vsub.s32 0, %v833
        %v835 = vrot.slane %v830, %v834
        %837 = vmatprep.subr.mxu0 0.0
        %838 = vmatpush1.msra.mxu0 %v814
        %839 = vmatprep.subr.mxu0 0.0
        %840 = vmatpush1.msra.mxu0 %v815
        %841 = vmatprep.subr.mxu0 0.0
        %842 = vmatpush1.msra.mxu0 %v816
        %843 = vmatprep.subr.mxu0 0.0
        %844 = vmatpush1.msra.mxu0 %v817
        %845 = vmatprep.subr.mxu0 0.0
        %846 = vmatpush1.msra.mxu0 %v818
        %847 = vmatprep.subr.mxu0 0.0
        %848 = vmatpush1.msra.mxu0 %v819
        %849 = vmatprep.subr.mxu0 0.0
        %850 = vmatpush1.msra.mxu0 %v820
        %851 = vmatprep.subr.mxu0 0.0
        %852 = vmatpush1.msra.mxu0 %v821
        %853 = vmatprep.subr.mxu0 0.0
        %854 = vmatpush1.msra.mxu0 %v822
        %855 = vmatprep.subr.mxu0 0.0
        %856 = vmatpush1.msra.mxu0 %v823
        %857 = vmatprep.subr.mxu0 0.0
        %858 = vmatpush1.msra.mxu0 %v824
        %859 = vmatprep.subr.mxu0 0.0
        %860 = vmatpush1.msra.mxu0 %v825
        %861 = vmatprep.subr.mxu0 0.0
        %862 = vmatpush1.msra.mxu0 %v826
        %863 = vmatprep.subr.mxu0 0.0
        %864 = vmatpush1.msra.mxu0 %v827
        %865 = vmatprep.subr.mxu0 0.0
        %866 = vmatpush1.msra.mxu0 %v828
        %867 = vmatprep.subr.mxu0 0.0
        %868 = vmatpush1.msra.mxu0 %v829
        %869 = vmatprep.subr.mxu0 0.0
        %870 = vmatpush1.msra.mxu0 0.0
        %871 = vmatprep.subr.mxu0 0.0
        %872 = vmatpush1.msra.mxu0 0.0
        %873 = vmatprep.subr.mxu0 0.0
        %874 = vmatpush1.msra.mxu0 0.0
        %875 = vmatprep.subr.mxu0 0.0
        %876 = vmatpush1.msra.mxu0 0.0
        %877 = vmatprep.subr.mxu0 0.0
        %878 = vmatpush1.msra.mxu0 0.0
        %879 = vmatprep.subr.mxu0 0.0
        %880 = vmatpush1.msra.mxu0 0.0
        %881 = vmatprep.subr.mxu0 0.0
        %882 = vmatpush1.msra.mxu0 0.0
        %883 = vmatprep.subr.mxu0 0.0
        %884 = vmatpush1.msra.mxu0 0.0
        %885 = vmatprep.subr.mxu0 0.0
        %886 = vmatpush1.msra.mxu0 0.0
        %887 = vmatprep.subr.mxu0 0.0
        %888 = vmatpush1.msra.mxu0 0.0
        %889 = vmatprep.subr.mxu0 0.0
        %890 = vmatpush1.msra.mxu0 0.0
        %891 = vmatprep.subr.mxu0 0.0
        %892 = vmatpush1.msra.mxu0 0.0
        %893 = vmatprep.subr.mxu0 0.0
        %894 = vmatpush1.msra.mxu0 0.0
        %895 = vmatprep.subr.mxu0 0.0
        %896 = vmatpush1.msra.mxu0 0.0
        %897 = vmatprep.subr.mxu0 0.0
        %898 = vmatpush1.msra.mxu0 0.0
        %899 = vmatprep.subr.mxu0 0.0
        %900 = vmatpush1.msra.mxu0 0.0
        %901 = vmatprep.mubr.f32.mxu0 0.0
        %902 = vmatmul.mubr.f32.gmra.mrb[0].mxu0 %v615
        %v903 = vpop.f32.mrb[0].mxu0
        %v904 = vadd.f32 %v835, %v903
        %v905 = vpop.f32.mrb[0].mxu0
        %906 = vmatprep.mubr.f32.mxu0 0.0
        %907 = vmatmul.mubr.f32.gmra.mrb[0].mxu0 %v616
        %v908 = vpop.f32.mrb[0].mxu0
        %v909 = vadd.f32 %v835, %v908
        %v910 = vpop.f32.mrb[0].mxu0
        %911 = vdwg.mxu0
        %vm912 = vcmask 261120
        %v914 = vsel %vm912, %v708, 0
        %v917 = vsel %vm912, %v713, 0
        %v920 = vsel %vm912, %v806, 0
        %v923 = vsel %vm912, %v811, 0
        %925 = vmatprep.subr.mxu0 0.0
        %926 = vmatpush1.xpose.msra.mxu0 %v920
        %927 = vmatprep.subr.mxu0 0.0
        %928 = vmatpush1.xpose.msra.mxu0 %v923
        %929 = vmatprep.subr.mxu0 0.0
        %930 = vmatpush1.xpose.msra.mxu0 0.0
        %931 = vmatprep.subr.mxu0 0.0
        %932 = vmatpush1.xpose.msra.mxu0 0.0
        %933 = vmatprep.subr.mxu0 0.0
        %934 = vmatpush1.xpose.msra.mxu0 0.0
        %935 = vmatprep.subr.mxu0 0.0
        %936 = vmatpush1.xpose.msra.mxu0 0.0
        %937 = vmatprep.subr.mxu0 0.0
        %938 = vmatpush1.xpose.msra.mxu0 0.0
        %939 = vmatprep.subr.mxu0 0.0
        %940 = vmatpush1.xpose.msra.mxu0 0.0
        %941 = vmatprep.subr.mxu0 0.0
        %942 = vmatpush1.xpose.msra.mxu0 0.0
        %943 = vmatprep.subr.mxu0 0.0
        %944 = vmatpush1.xpose.msra.mxu0 0.0
        %945 = vmatprep.subr.mxu0 0.0
        %946 = vmatpush1.xpose.msra.mxu0 0.0
        %947 = vmatprep.subr.mxu0 0.0
        %948 = vmatpush1.xpose.msra.mxu0 0.0
        %949 = vmatprep.subr.mxu0 0.0
        %950 = vmatpush1.xpose.msra.mxu0 0.0
        %951 = vmatprep.subr.mxu0 0.0
        %952 = vmatpush1.xpose.msra.mxu0 0.0
        %953 = vmatprep.subr.mxu0 0.0
        %954 = vmatpush1.xpose.msra.mxu0 0.0
        %955 = vmatprep.subr.mxu0 0.0
        %956 = vmatpush1.xpose.msra.mxu0 0.0
        %957 = vmatprep.subr.mxu0 0.0
        %958 = vmatpush1.xpose.msra.mxu0 0.0
        %959 = vmatprep.subr.mxu0 0.0
        %960 = vmatpush1.xpose.msra.mxu0 0.0
        %961 = vmatprep.subr.mxu0 0.0
        %962 = vmatpush1.xpose.msra.mxu0 0.0
        %963 = vmatprep.subr.mxu0 0.0
        %964 = vmatpush1.xpose.msra.mxu0 0.0
        %965 = vmatprep.subr.mxu0 0.0
        %966 = vmatpush1.xpose.msra.mxu0 0.0
        %967 = vmatprep.subr.mxu0 0.0
        %968 = vmatpush1.xpose.msra.mxu0 0.0
        %969 = vmatprep.subr.mxu0 0.0
        %970 = vmatpush1.xpose.msra.mxu0 0.0
        %971 = vmatprep.subr.mxu0 0.0
        %972 = vmatpush1.xpose.msra.mxu0 0.0
        %973 = vmatprep.subr.mxu0 0.0
        %974 = vmatpush1.xpose.msra.mxu0 0.0
        %975 = vmatprep.subr.mxu0 0.0
        %976 = vmatpush1.xpose.msra.mxu0 0.0
        %977 = vmatprep.subr.mxu0 0.0
        %978 = vmatpush1.xpose.msra.mxu0 0.0
        %979 = vmatprep.subr.mxu0 0.0
        %980 = vmatpush1.xpose.msra.mxu0 0.0
        %981 = vmatprep.subr.mxu0 0.0
        %982 = vmatpush1.xpose.msra.mxu0 0.0
        %983 = vmatprep.subr.mxu0 0.0
        %984 = vmatpush1.xpose.msra.mxu0 0.0
        %985 = vmatprep.subr.mxu0 0.0
        %986 = vmatpush1.xpose.msra.mxu0 0.0
        %987 = vmatprep.subr.mxu0 0.0
        %988 = vmatpush1.xpose.msra.mxu0 0.0
        %989 = vmatprep.mubr.f32.mxu0 0.0
        %990 = vmatmul.mubr.f32.gmra.mrb[0].mxu0 %v914
        %v991 = vpop.f32.mrb[0].mxu0
        %v992 = vadd.f32 0.0, %v991
        %v993 = vpop.f32.mrb[0].mxu0
        %994 = vmatprep.mubr.f32.mxu0 0.0
        %995 = vmatmul.mubr.f32.gmra.mrb[0].mxu0 %v917
        %v996 = vpop.f32.mrb[0].mxu0
        %v997 = vadd.f32 0.0, %v996
        %v998 = vpop.f32.mrb[0].mxu0
        %999 = vdwg.mxu0
        %v1000 = vmul.f32 %v992, 0.17677669
        %v1001 = vmul.f32 %v997, 0.17677669
        %vm1002 = vcmp.eq.f32.partialorder %v617, 0.0
        %v1003 = vsel %vm1002, 1, 0
        %v1004 = vlaneseq
        %v1005 = vshrl.u32 %v1004, 7
        %v1006 = vsub.s32 0, %v1005
        %v1007 = vrot.slane %v1003, %v1006
        %vm1008 = vcmp.eq.s32.totalorder %v1007, 1
        %v1009 = vsel %vm1008, -1e+10, %v1000
        %v1010 = vsel %vm1008, -1e+10, %v1001
        %vm1011 = vcmask 130048
        %v1012 = vsel %vm1011, %v1009, -inf
        %1013 = vmax.xlane.f32.xlu0 %v1012
        %v1014 = vpop.xlane.xlu0 %1013
        %v1015 = vsel %vm1011, %v1010, -inf
        %1016 = vmax.xlane.f32.xlu0 %v1015
        %v1017 = vpop.xlane.xlu0 %1016
        %v1018 = vsub.f32 %v1009, %v1014
        %v1019 = vsub.f32 %v1010, %v1017
        %v1020 = vmul.f32 %v1018, 1.442695
        %v1021 = vpow.pop %v1020
        %v1022 = vmul.f32 %v1019, 1.442695
        %v1023 = vpow.pop %v1022
        %v1024 = vsel %vm1011, %v1021, 0.0
        %1025 = vadd.xlane.f32.xlu0 %v1024
        %v1026 = vpop.xlane.xlu0 %1025
        %v1027 = vsel %vm1011, %v1023, 0.0
        %1028 = vadd.xlane.f32.xlu0 %v1027
        %v1029 = vpop.xlane.xlu0 %1028
        %v1030 = vrcp.pop %v1026
        %v1031 = vmul.f32 %v1021, %v1030
        %v1032 = vrcp.pop %v1029
        %v1033 = vmul.f32 %v1023, %v1032
        %v1035 = vsel %vm1011, %v1031, 0
        %v1038 = vsel %vm1011, %v1033, 0
        %1040 = vmatprep.subr.mxu0 0.0
        %1041 = vmatpush1.msra.mxu0 %v904
        %1042 = vmatprep.subr.mxu0 0.0
        %1043 = vmatpush1.msra.mxu0 %v909
        %1044 = vmatprep.subr.mxu0 0.0
        %1045 = vmatpush1.msra.mxu0 0.0
        %1046 = vmatprep.subr.mxu0 0.0
        %1047 = vmatpush1.msra.mxu0 0.0
        %1048 = vmatprep.subr.mxu0 0.0
        %1049 = vmatpush1.msra.mxu0 0.0
        %1050 = vmatprep.subr.mxu0 0.0
        %1051 = vmatpush1.msra.mxu0 0.0
        %1052 = vmatprep.subr.mxu0 0.0
        %1053 = vmatpush1.msra.mxu0 0.0
        %1054 = vmatprep.subr.mxu0 0.0
        %1055 = vmatpush1.msra.mxu0 0.0
        %1056 = vmatprep.subr.mxu0 0.0
        %1057 = vmatpush1.msra.mxu0 0.0
        %1058 = vmatprep.subr.mxu0 0.0
        %1059 = vmatpush1.msra.mxu0 0.0
        %1060 = vmatprep.subr.mxu0 0.0
        %1061 = vmatpush1.msra.mxu0 0.0
        %1062 = vmatprep.subr.mxu0 0.0
        %1063 = vmatpush1.msra.mxu0 0.0
        %1064 = vmatprep.subr.mxu0 0.0
        %1065 = vmatpush1.msra.mxu0 0.0
        %1066 = vmatprep.subr.mxu0 0.0
        %1067 = vmatpush1.msra.mxu0 0.0
        %1068 = vmatprep.subr.mxu0 0.0
        %1069 = vmatpush1.msra.mxu0 0.0
        %1070 = vmatprep.subr.mxu0 0.0
        %1071 = vmatpush1.msra.mxu0 0.0
        %1072 = vmatprep.subr.mxu0 0.0
        %1073 = vmatpush1.msra.mxu0 0.0
        %1074 = vmatprep.subr.mxu0 0.0
        %1075 = vmatpush1.msra.mxu0 0.0
        %1076 = vmatprep.subr.mxu0 0.0
        %1077 = vmatpush1.msra.mxu0 0.0
        %1078 = vmatprep.subr.mxu0 0.0
        %1079 = vmatpush1.msra.mxu0 0.0
        %1080 = vmatprep.subr.mxu0 0.0
        %1081 = vmatpush1.msra.mxu0 0.0
        %1082 = vmatprep.subr.mxu0 0.0
        %1083 = vmatpush1.msra.mxu0 0.0
        %1084 = vmatprep.subr.mxu0 0.0
        %1085 = vmatpush1.msra.mxu0 0.0
        %1086 = vmatprep.subr.mxu0 0.0
        %1087 = vmatpush1.msra.mxu0 0.0
        %1088 = vmatprep.subr.mxu0 0.0
        %1089 = vmatpush1.msra.mxu0 0.0
        %1090 = vmatprep.subr.mxu0 0.0
        %1091 = vmatpush1.msra.mxu0 0.0
        %1092 = vmatprep.subr.mxu0 0.0
        %1093 = vmatpush1.msra.mxu0 0.0
        %1094 = vmatprep.subr.mxu0 0.0
        %1095 = vmatpush1.msra.mxu0 0.0
        %1096 = vmatprep.subr.mxu0 0.0
        %1097 = vmatpush1.msra.mxu0 0.0
        %1098 = vmatprep.subr.mxu0 0.0
        %1099 = vmatpush1.msra.mxu0 0.0
        %1100 = vmatprep.subr.mxu0 0.0
        %1101 = vmatpush1.msra.mxu0 0.0
        %1102 = vmatprep.subr.mxu0 0.0
        %1103 = vmatpush1.msra.mxu0 0.0
        %1104 = vmatprep.mubr.f32.mxu0 0.0
        %1105 = vmatmul.mubr.f32.gmra.mrb[0].mxu0 %v1035
        %v1106 = vpop.f32.mrb[0].mxu0
        %v1107 = vadd.f32 0.0, %v1106
        %v1108 = vpop.f32.mrb[0].mxu0
        %1109 = vmatprep.mubr.f32.mxu0 0.0
        %1110 = vmatmul.mubr.f32.gmra.mrb[0].mxu0 %v1038
        %v1111 = vpop.f32.mrb[0].mxu0
        %v1112 = vadd.f32 0.0, %v1111
        %v1113 = vpop.f32.mrb[0].mxu0
        %1114 = vdwg.mxu0
        %1115 = vrot.lane.b32.xlu0 %v708, 96
        %v1116 = vpop.permute.xlu0 %1115
        %1117 = vrot.lane.b32.xlu0 %v713, 96
        %v1118 = vpop.permute.xlu0 %1117
        %1119 = vrot.lane.b32.xlu0 %v806, 96
        %v1120 = vpop.permute.xlu0 %1119
        %1121 = vrot.lane.b32.xlu0 %v811, 96
        %v1122 = vpop.permute.xlu0 %1121
        %v1123 = vsel %vm912, %v1116, 0
        %v1125 = vsel %vm912, %v1118, 0
        %v1127 = vsel %vm912, %v1120, 0
        %v1129 = vsel %vm912, %v1122, 0
        %1131 = vmatprep.subr.mxu0 0.0
        %1132 = vmatpush1.xpose.msra.mxu0 %v1127
        %1133 = vmatprep.subr.mxu0 0.0
        %1134 = vmatpush1.xpose.msra.mxu0 %v1129
        %1135 = vmatprep.subr.mxu0 0.0
        %1136 = vmatpush1.xpose.msra.mxu0 0.0
        %1137 = vmatprep.subr.mxu0 0.0
        %1138 = vmatpush1.xpose.msra.mxu0 0.0
        %1139 = vmatprep.subr.mxu0 0.0
        %1140 = vmatpush1.xpose.msra.mxu0 0.0
        %1141 = vmatprep.subr.mxu0 0.0
        %1142 = vmatpush1.xpose.msra.mxu0 0.0
        %1143 = vmatprep.subr.mxu0 0.0
        %1144 = vmatpush1.xpose.msra.mxu0 0.0
        %1145 = vmatprep.subr.mxu0 0.0
        %1146 = vmatpush1.xpose.msra.mxu0 0.0
        %1147 = vmatprep.subr.mxu0 0.0
        %1148 = vmatpush1.xpose.msra.mxu0 0.0
        %1149 = vmatprep.subr.mxu0 0.0
        %1150 = vmatpush1.xpose.msra.mxu0 0.0
        %1151 = vmatprep.subr.mxu0 0.0
        %1152 = vmatpush1.xpose.msra.mxu0 0.0
        %1153 = vmatprep.subr.mxu0 0.0
        %1154 = vmatpush1.xpose.msra.mxu0 0.0
        %1155 = vmatprep.subr.mxu0 0.0
        %1156 = vmatpush1.xpose.msra.mxu0 0.0
        %1157 = vmatprep.subr.mxu0 0.0
        %1158 = vmatpush1.xpose.msra.mxu0 0.0
        %1159 = vmatprep.subr.mxu0 0.0
        %1160 = vmatpush1.xpose.msra.mxu0 0.0
        %1161 = vmatprep.subr.mxu0 0.0
        %1162 = vmatpush1.xpose.msra.mxu0 0.0
        %1163 = vmatprep.subr.mxu0 0.0
        %1164 = vmatpush1.xpose.msra.mxu0 0.0
        %1165 = vmatprep.subr.mxu0 0.0
        %1166 = vmatpush1.xpose.msra.mxu0 0.0
        %1167 = vmatprep.subr.mxu0 0.0
        %1168 = vmatpush1.xpose.msra.mxu0 0.0
        %1169 = vmatprep.subr.mxu0 0.0
        %1170 = vmatpush1.xpose.msra.mxu0 0.0
        %1171 = vmatprep.subr.mxu0 0.0
        %1172 = vmatpush1.xpose.msra.mxu0 0.0
        %1173 = vmatprep.subr.mxu0 0.0
        %1174 = vmatpush1.xpose.msra.mxu0 0.0
        %1175 = vmatprep.subr.mxu0 0.0
        %1176 = vmatpush1.xpose.msra.mxu0 0.0
        %1177 = vmatprep.subr.mxu0 0.0
        %1178 = vmatpush1.xpose.msra.mxu0 0.0
        %1179 = vmatprep.subr.mxu0 0.0
        %1180 = vmatpush1.xpose.msra.mxu0 0.0
        %1181 = vmatprep.subr.mxu0 0.0
        %1182 = vmatpush1.xpose.msra.mxu0 0.0
        %1183 = vmatprep.subr.mxu0 0.0
        %1184 = vmatpush1.xpose.msra.mxu0 0.0
        %1185 = vmatprep.subr.mxu0 0.0
        %1186 = vmatpush1.xpose.msra.mxu0 0.0
        %1187 = vmatprep.subr.mxu0 0.0
        %1188 = vmatpush1.xpose.msra.mxu0 0.0
        %1189 = vmatprep.subr.mxu0 0.0
        %1190 = vmatpush1.xpose.msra.mxu0 0.0
        %1191 = vmatprep.subr.mxu0 0.0
        %1192 = vmatpush1.xpose.msra.mxu0 0.0
        %1193 = vmatprep.subr.mxu0 0.0
        %1194 = vmatpush1.xpose.msra.mxu0 0.0
        %1195 = vmatprep.mubr.f32.mxu0 0.0
        %1196 = vmatmul.mubr.f32.gmra.mrb[0].mxu0 %v1123
        %v1197 = vpop.f32.mrb[0].mxu0
        %v1198 = vadd.f32 0.0, %v1197
        %v1199 = vpop.f32.mrb[0].mxu0
        %1200 = vmatprep.mubr.f32.mxu0 0.0
        %1201 = vmatmul.mubr.f32.gmra.mrb[0].mxu0 %v1125
        %v1202 = vpop.f32.mrb[0].mxu0
        %v1203 = vadd.f32 0.0, %v1202
        %v1204 = vpop.f32.mrb[0].mxu0
        %1205 = vdwg.mxu0
        %v1206 = vmul.f32 %v1198, 0.17677669
        %v1207 = vmul.f32 %v1203, 0.17677669
        %v1208 = vsel %vm1008, -1e+10, %v1206
        %v1209 = vsel %vm1008, -1e+10, %v1207
        %v1210 = vsel %vm1011, %v1208, -inf
        %1211 = vmax.xlane.f32.xlu0 %v1210
        %v1212 = vpop.xlane.xlu0 %1211
        %v1213 = vsel %vm1011, %v1209, -inf
        %1214 = vmax.xlane.f32.xlu0 %v1213
        %v1215 = vpop.xlane.xlu0 %1214
        %v1216 = vsub.f32 %v1208, %v1212
        %v1217 = vsub.f32 %v1209, %v1215
        %v1218 = vmul.f32 %v1216, 1.442695
        %v1219 = vpow.pop %v1218
        %v1220 = vmul.f32 %v1217, 1.442695
        %v1221 = vpow.pop %v1220
        %v1222 = vsel %vm1011, %v1219, 0.0
        %1223 = vadd.xlane.f32.xlu0 %v1222
        %v1224 = vpop.xlane.xlu0 %1223
        %v1225 = vsel %vm1011, %v1221, 0.0
        %1226 = vadd.xlane.f32.xlu0 %v1225
        %v1227 = vpop.xlane.xlu0 %1226
        %v1228 = vrcp.pop %v1224
        %v1229 = vmul.f32 %v1219, %v1228
        %v1230 = vrcp.pop %v1227
        %v1231 = vmul.f32 %v1221, %v1230
        %1234 = vrot.lane.b32.xlu0 %v904, 96
        %v1235 = vpop.permute.xlu0 %1234
        %1236 = vrot.lane.b32.xlu0 %v909, 96
        %v1237 = vpop.permute.xlu0 %1236
        %v1241 = vsel %vm1011, %v1229, 0
        %v1244 = vsel %vm1011, %v1231, 0
        %1246 = vmatprep.subr.mxu0 0.0
        %1247 = vmatpush1.msra.mxu0 %v1235
        %1248 = vmatprep.subr.mxu0 0.0
        %1249 = vmatpush1.msra.mxu0 %v1237
        %1250 = vmatprep.subr.mxu0 0.0
        %1251 = vmatpush1.msra.mxu0 0.0
        %1252 = vmatprep.subr.mxu0 0.0
        %1253 = vmatpush1.msra.mxu0 0.0
        %1254 = vmatprep.subr.mxu0 0.0
        %1255 = vmatpush1.msra.mxu0 0.0
        %1256 = vmatprep.subr.mxu0 0.0
        %1257 = vmatpush1.msra.mxu0 0.0
        %1258 = vmatprep.subr.mxu0 0.0
        %1259 = vmatpush1.msra.mxu0 0.0
        %1260 = vmatprep.subr.mxu0 0.0
        %1261 = vmatpush1.msra.mxu0 0.0
        %1262 = vmatprep.subr.mxu0 0.0
        %1263 = vmatpush1.msra.mxu0 0.0
        %1264 = vmatprep.subr.mxu0 0.0
        %1265 = vmatpush1.msra.mxu0 0.0
        %1266 = vmatprep.subr.mxu0 0.0
        %1267 = vmatpush1.msra.mxu0 0.0
        %1268 = vmatprep.subr.mxu0 0.0
        %1269 = vmatpush1.msra.mxu0 0.0
        %1270 = vmatprep.subr.mxu0 0.0
        %1271 = vmatpush1.msra.mxu0 0.0
        %1272 = vmatprep.subr.mxu0 0.0
        %1273 = vmatpush1.msra.mxu0 0.0
        %1274 = vmatprep.subr.mxu0 0.0
        %1275 = vmatpush1.msra.mxu0 0.0
        %1276 = vmatprep.subr.mxu0 0.0
        %1277 = vmatpush1.msra.mxu0 0.0
        %1278 = vmatprep.subr.mxu0 0.0
        %1279 = vmatpush1.msra.mxu0 0.0
        %1280 = vmatprep.subr.mxu0 0.0
        %1281 = vmatpush1.msra.mxu0 0.0
        %1282 = vmatprep.subr.mxu0 0.0
        %1283 = vmatpush1.msra.mxu0 0.0
        %1284 = vmatprep.subr.mxu0 0.0
        %1285 = vmatpush1.msra.mxu0 0.0
        %1286 = vmatprep.subr.mxu0 0.0
        %1287 = vmatpush1.msra.mxu0 0.0
        %1288 = vmatprep.subr.mxu0 0.0
        %1289 = vmatpush1.msra.mxu0 0.0
        %1290 = vmatprep.subr.mxu0 0.0
        %1291 = vmatpush1.msra.mxu0 0.0
        %1292 = vmatprep.subr.mxu0 0.0
        %1293 = vmatpush1.msra.mxu0 0.0
        %1294 = vmatprep.subr.mxu0 0.0
        %1295 = vmatpush1.msra.mxu0 0.0
        %1296 = vmatprep.subr.mxu0 0.0
        %1297 = vmatpush1.msra.mxu0 0.0
        %1298 = vmatprep.subr.mxu0 0.0
        %1299 = vmatpush1.msra.mxu0 0.0
        %1300 = vmatprep.subr.mxu0 0.0
        %1301 = vmatpush1.msra.mxu0 0.0
        %1302 = vmatprep.subr.mxu0 0.0
        %1303 = vmatpush1.msra.mxu0 0.0
        %1304 = vmatprep.subr.mxu0 0.0
        %1305 = vmatpush1.msra.mxu0 0.0
        %1306 = vmatprep.subr.mxu0 0.0
        %1307 = vmatpush1.msra.mxu0 0.0
        %1308 = vmatprep.subr.mxu0 0.0
        %1309 = vmatpush1.msra.mxu0 0.0
        %1310 = vmatprep.mubr.f32.mxu0 0.0
        %1311 = vmatmul.mubr.f32.gmra.mrb[0].mxu0 %v1241
        %v1312 = vpop.f32.mrb[0].mxu0
        %v1313 = vadd.f32 0.0, %v1312
        %v1314 = vpop.f32.mrb[0].mxu0
        %1315 = vmatprep.mubr.f32.mxu0 0.0
        %1316 = vmatmul.mubr.f32.gmra.mrb[0].mxu0 %v1244
        %v1317 = vpop.f32.mrb[0].mxu0
        %v1318 = vadd.f32 0.0, %v1317
        %v1319 = vpop.f32.mrb[0].mxu0
        %1320 = vdwg.mxu0
        %1321 = vrot.lane.b32.xlu0 %v708, 64
        %v1322 = vpop.permute.xlu0 %1321
        %1323 = vrot.lane.b32.xlu0 %v713, 64
        %v1324 = vpop.permute.xlu0 %1323
        %1325 = vrot.lane.b32.xlu0 %v806, 64
        %v1326 = vpop.permute.xlu0 %1325
        %1327 = vrot.lane.b32.xlu0 %v811, 64
        %v1328 = vpop.permute.xlu0 %1327
        %v1329 = vsel %vm912, %v1322, 0
        %v1331 = vsel %vm912, %v1324, 0
        %v1333 = vsel %vm912, %v1326, 0
        %v1335 = vsel %vm912, %v1328, 0
        %1337 = vmatprep.subr.mxu0 0.0
        %1338 = vmatpush1.xpose.msra.mxu0 %v1333
        %1339 = vmatprep.subr.mxu0 0.0
        %1340 = vmatpush1.xpose.msra.mxu0 %v1335
        %1341 = vmatprep.subr.mxu0 0.0
        %1342 = vmatpush1.xpose.msra.mxu0 0.0
        %1343 = vmatprep.subr.mxu0 0.0
        %1344 = vmatpush1.xpose.msra.mxu0 0.0
        %1345 = vmatprep.subr.mxu0 0.0
        %1346 = vmatpush1.xpose.msra.mxu0 0.0
        %1347 = vmatprep.subr.mxu0 0.0
        %1348 = vmatpush1.xpose.msra.mxu0 0.0
        %1349 = vmatprep.subr.mxu0 0.0
        %1350 = vmatpush1.xpose.msra.mxu0 0.0
        %1351 = vmatprep.subr.mxu0 0.0
        %1352 = vmatpush1.xpose.msra.mxu0 0.0
        %1353 = vmatprep.subr.mxu0 0.0
        %1354 = vmatpush1.xpose.msra.mxu0 0.0
        %1355 = vmatprep.subr.mxu0 0.0
        %1356 = vmatpush1.xpose.msra.mxu0 0.0
        %1357 = vmatprep.subr.mxu0 0.0
        %1358 = vmatpush1.xpose.msra.mxu0 0.0
        %1359 = vmatprep.subr.mxu0 0.0
        %1360 = vmatpush1.xpose.msra.mxu0 0.0
        %1361 = vmatprep.subr.mxu0 0.0
        %1362 = vmatpush1.xpose.msra.mxu0 0.0
        %1363 = vmatprep.subr.mxu0 0.0
        %1364 = vmatpush1.xpose.msra.mxu0 0.0
        %1365 = vmatprep.subr.mxu0 0.0
        %1366 = vmatpush1.xpose.msra.mxu0 0.0
        %1367 = vmatprep.subr.mxu0 0.0
        %1368 = vmatpush1.xpose.msra.mxu0 0.0
        %1369 = vmatprep.subr.mxu0 0.0
        %1370 = vmatpush1.xpose.msra.mxu0 0.0
        %1371 = vmatprep.subr.mxu0 0.0
        %1372 = vmatpush1.xpose.msra.mxu0 0.0
        %1373 = vmatprep.subr.mxu0 0.0
        %1374 = vmatpush1.xpose.msra.mxu0 0.0
        %1375 = vmatprep.subr.mxu0 0.0
        %1376 = vmatpush1.xpose.msra.mxu0 0.0
        %1377 = vmatprep.subr.mxu0 0.0
        %1378 = vmatpush1.xpose.msra.mxu0 0.0
        %1379 = vmatprep.subr.mxu0 0.0
        %1380 = vmatpush1.xpose.msra.mxu0 0.0
        %1381 = vmatprep.subr.mxu0 0.0
        %1382 = vmatpush1.xpose.msra.mxu0 0.0
        %1383 = vmatprep.subr.mxu0 0.0
        %1384 = vmatpush1.xpose.msra.mxu0 0.0
        %1385 = vmatprep.subr.mxu0 0.0
        %1386 = vmatpush1.xpose.msra.mxu0 0.0
        %1387 = vmatprep.subr.mxu0 0.0
        %1388 = vmatpush1.xpose.msra.mxu0 0.0
        %1389 = vmatprep.subr.mxu0 0.0
        %1390 = vmatpush1.xpose.msra.mxu0 0.0
        %1391 = vmatprep.subr.mxu0 0.0
        %1392 = vmatpush1.xpose.msra.mxu0 0.0
        %1393 = vmatprep.subr.mxu0 0.0
        %1394 = vmatpush1.xpose.msra.mxu0 0.0
        %1395 = vmatprep.subr.mxu0 0.0
        %1396 = vmatpush1.xpose.msra.mxu0 0.0
        %1397 = vmatprep.subr.mxu0 0.0
        %1398 = vmatpush1.xpose.msra.mxu0 0.0
        %1399 = vmatprep.subr.mxu0 0.0
        %1400 = vmatpush1.xpose.msra.mxu0 0.0
        %1401 = vmatprep.mubr.f32.mxu0 0.0
        %1402 = vmatmul.mubr.f32.gmra.mrb[0].mxu0 %v1329
        %v1403 = vpop.f32.mrb[0].mxu0
        %v1404 = vadd.f32 0.0, %v1403
        %v1405 = vpop.f32.mrb[0].mxu0
        %1406 = vmatprep.mubr.f32.mxu0 0.0
        %1407 = vmatmul.mubr.f32.gmra.mrb[0].mxu0 %v1331
        %v1408 = vpop.f32.mrb[0].mxu0
        %v1409 = vadd.f32 0.0, %v1408
        %v1410 = vpop.f32.mrb[0].mxu0
        %1411 = vdwg.mxu0
        %v1412 = vmul.f32 %v1404, 0.17677669
        %v1413 = vmul.f32 %v1409, 0.17677669
        %v1414 = vsel %vm1008, -1e+10, %v1412
        %v1415 = vsel %vm1008, -1e+10, %v1413
        %v1416 = vsel %vm1011, %v1414, -inf
        %1417 = vmax.xlane.f32.xlu0 %v1416
        %v1418 = vpop.xlane.xlu0 %1417
        %v1419 = vsel %vm1011, %v1415, -inf
        %1420 = vmax.xlane.f32.xlu0 %v1419
        %v1421 = vpop.xlane.xlu0 %1420
        %v1422 = vsub.f32 %v1414, %v1418
        %v1423 = vsub.f32 %v1415, %v1421
        %v1424 = vmul.f32 %v1422, 1.442695
        %v1425 = vpow.pop %v1424
        %v1426 = vmul.f32 %v1423, 1.442695
        %v1427 = vpow.pop %v1426
        %v1428 = vsel %vm1011, %v1425, 0.0
        %1429 = vadd.xlane.f32.xlu0 %v1428
        %v1430 = vpop.xlane.xlu0 %1429
        %v1431 = vsel %vm1011, %v1427, 0.0
        %1432 = vadd.xlane.f32.xlu0 %v1431
        %v1433 = vpop.xlane.xlu0 %1432
        %v1434 = vrcp.pop %v1430
        %v1435 = vmul.f32 %v1425, %v1434
        %v1436 = vrcp.pop %v1433
        %v1437 = vmul.f32 %v1427, %v1436
        %1438 = vrot.lane.b32.xlu0 %v904, 64
        %v1439 = vpop.permute.xlu0 %1438
        %1440 = vrot.lane.b32.xlu0 %v909, 64
        %v1441 = vpop.permute.xlu0 %1440
        %v1445 = vsel %vm1011, %v1435, 0
        %v1448 = vsel %vm1011, %v1437, 0
        %1450 = vmatprep.subr.mxu0 0.0
        %1451 = vmatpush1.msra.mxu0 %v1439
        %1452 = vmatprep.subr.mxu0 0.0
        %1453 = vmatpush1.msra.mxu0 %v1441
        %1454 = vmatprep.subr.mxu0 0.0
        %1455 = vmatpush1.msra.mxu0 0.0
        %1456 = vmatprep.subr.mxu0 0.0
        %1457 = vmatpush1.msra.mxu0 0.0
        %1458 = vmatprep.subr.mxu0 0.0
        %1459 = vmatpush1.msra.mxu0 0.0
        %1460 = vmatprep.subr.mxu0 0.0
        %1461 = vmatpush1.msra.mxu0 0.0
        %1462 = vmatprep.subr.mxu0 0.0
        %1463 = vmatpush1.msra.mxu0 0.0
        %1464 = vmatprep.subr.mxu0 0.0
        %1465 = vmatpush1.msra.mxu0 0.0
        %1466 = vmatprep.subr.mxu0 0.0
        %1467 = vmatpush1.msra.mxu0 0.0
        %1468 = vmatprep.subr.mxu0 0.0
        %1469 = vmatpush1.msra.mxu0 0.0
        %1470 = vmatprep.subr.mxu0 0.0
        %1471 = vmatpush1.msra.mxu0 0.0
        %1472 = vmatprep.subr.mxu0 0.0
        %1473 = vmatpush1.msra.mxu0 0.0
        %1474 = vmatprep.subr.mxu0 0.0
        %1475 = vmatpush1.msra.mxu0 0.0
        %1476 = vmatprep.subr.mxu0 0.0
        %1477 = vmatpush1.msra.mxu0 0.0
        %1478 = vmatprep.subr.mxu0 0.0
        %1479 = vmatpush1.msra.mxu0 0.0
        %1480 = vmatprep.subr.mxu0 0.0
        %1481 = vmatpush1.msra.mxu0 0.0
        %1482 = vmatprep.subr.mxu0 0.0
        %1483 = vmatpush1.msra.mxu0 0.0
        %1484 = vmatprep.subr.mxu0 0.0
        %1485 = vmatpush1.msra.mxu0 0.0
        %1486 = vmatprep.subr.mxu0 0.0
        %1487 = vmatpush1.msra.mxu0 0.0
        %1488 = vmatprep.subr.mxu0 0.0
        %1489 = vmatpush1.msra.mxu0 0.0
        %1490 = vmatprep.subr.mxu0 0.0
        %1491 = vmatpush1.msra.mxu0 0.0
        %1492 = vmatprep.subr.mxu0 0.0
        %1493 = vmatpush1.msra.mxu0 0.0
        %1494 = vmatprep.subr.mxu0 0.0
        %1495 = vmatpush1.msra.mxu0 0.0
        %1496 = vmatprep.subr.mxu0 0.0
        %1497 = vmatpush1.msra.mxu0 0.0
        %1498 = vmatprep.subr.mxu0 0.0
        %1499 = vmatpush1.msra.mxu0 0.0
        %1500 = vmatprep.subr.mxu0 0.0
        %1501 = vmatpush1.msra.mxu0 0.0
        %1502 = vmatprep.subr.mxu0 0.0
        %1503 = vmatpush1.msra.mxu0 0.0
        %1504 = vmatprep.subr.mxu0 0.0
        %1505 = vmatpush1.msra.mxu0 0.0
        %1506 = vmatprep.subr.mxu0 0.0
        %1507 = vmatpush1.msra.mxu0 0.0
        %1508 = vmatprep.subr.mxu0 0.0
        %1509 = vmatpush1.msra.mxu0 0.0
        %1510 = vmatprep.subr.mxu0 0.0
        %1511 = vmatpush1.msra.mxu0 0.0
        %1512 = vmatprep.subr.mxu0 0.0
        %1513 = vmatpush1.msra.mxu0 0.0
        %1514 = vmatprep.mubr.f32.mxu0 0.0
        %1515 = vmatmul.mubr.f32.gmra.mrb[0].mxu0 %v1445
        %v1516 = vpop.f32.mrb[0].mxu0
        %v1517 = vadd.f32 0.0, %v1516
        %v1518 = vpop.f32.mrb[0].mxu0
        %1519 = vmatprep.mubr.f32.mxu0 0.0
        %1520 = vmatmul.mubr.f32.gmra.mrb[0].mxu0 %v1448
        %v1521 = vpop.f32.mrb[0].mxu0
        %v1522 = vadd.f32 0.0, %v1521
        %v1523 = vpop.f32.mrb[0].mxu0
        %1524 = vdwg.mxu0
        %1525 = vrot.lane.b32.xlu0 %v708, 32
        %v1526 = vpop.permute.xlu0 %1525
        %1527 = vrot.lane.b32.xlu0 %v713, 32
        %v1528 = vpop.permute.xlu0 %1527
        %1529 = vrot.lane.b32.xlu0 %v806, 32
        %v1530 = vpop.permute.xlu0 %1529
        %1531 = vrot.lane.b32.xlu0 %v811, 32
        %v1532 = vpop.permute.xlu0 %1531
        %v1533 = vsel %vm912, %v1526, 0
        %v1535 = vsel %vm912, %v1528, 0
        %v1537 = vsel %vm912, %v1530, 0
        %v1539 = vsel %vm912, %v1532, 0
        %1541 = vmatprep.subr.mxu0 0.0
        %1542 = vmatpush1.xpose.msra.mxu0 %v1537
        %1543 = vmatprep.subr.mxu0 0.0
        %1544 = vmatpush1.xpose.msra.mxu0 %v1539
        %1545 = vmatprep.subr.mxu0 0.0
        %1546 = vmatpush1.xpose.msra.mxu0 0.0
        %1547 = vmatprep.subr.mxu0 0.0
        %1548 = vmatpush1.xpose.msra.mxu0 0.0
        %1549 = vmatprep.subr.mxu0 0.0
        %1550 = vmatpush1.xpose.msra.mxu0 0.0
        %1551 = vmatprep.subr.mxu0 0.0
        %1552 = vmatpush1.xpose.msra.mxu0 0.0
        %1553 = vmatprep.subr.mxu0 0.0
        %1554 = vmatpush1.xpose.msra.mxu0 0.0
        %1555 = vmatprep.subr.mxu0 0.0
        %1556 = vmatpush1.xpose.msra.mxu0 0.0
        %1557 = vmatprep.subr.mxu0 0.0
        %1558 = vmatpush1.xpose.msra.mxu0 0.0
        %1559 = vmatprep.subr.mxu0 0.0
        %1560 = vmatpush1.xpose.msra.mxu0 0.0
        %1561 = vmatprep.subr.mxu0 0.0
        %1562 = vmatpush1.xpose.msra.mxu0 0.0
        %1563 = vmatprep.subr.mxu0 0.0
        %1564 = vmatpush1.xpose.msra.mxu0 0.0
        %1565 = vmatprep.subr.mxu0 0.0
        %1566 = vmatpush1.xpose.msra.mxu0 0.0
        %1567 = vmatprep.subr.mxu0 0.0
        %1568 = vmatpush1.xpose.msra.mxu0 0.0
        %1569 = vmatprep.subr.mxu0 0.0
        %1570 = vmatpush1.xpose.msra.mxu0 0.0
        %1571 = vmatprep.subr.mxu0 0.0
        %1572 = vmatpush1.xpose.msra.mxu0 0.0
        %1573 = vmatprep.subr.mxu0 0.0
        %1574 = vmatpush1.xpose.msra.mxu0 0.0
        %1575 = vmatprep.subr.mxu0 0.0
        %1576 = vmatpush1.xpose.msra.mxu0 0.0
        %1577 = vmatprep.subr.mxu0 0.0
        %1578 = vmatpush1.xpose.msra.mxu0 0.0
        %1579 = vmatprep.subr.mxu0 0.0
        %1580 = vmatpush1.xpose.msra.mxu0 0.0
        %1581 = vmatprep.subr.mxu0 0.0
        %1582 = vmatpush1.xpose.msra.mxu0 0.0
        %1583 = vmatprep.subr.mxu0 0.0
        %1584 = vmatpush1.xpose.msra.mxu0 0.0
        %1585 = vmatprep.subr.mxu0 0.0
        %1586 = vmatpush1.xpose.msra.mxu0 0.0
        %1587 = vmatprep.subr.mxu0 0.0
        %1588 = vmatpush1.xpose.msra.mxu0 0.0
        %1589 = vmatprep.subr.mxu0 0.0
        %1590 = vmatpush1.xpose.msra.mxu0 0.0
        %1591 = vmatprep.subr.mxu0 0.0
        %1592 = vmatpush1.xpose.msra.mxu0 0.0
        %1593 = vmatprep.subr.mxu0 0.0
        %1594 = vmatpush1.xpose.msra.mxu0 0.0
        %1595 = vmatprep.subr.mxu0 0.0
        %1596 = vmatpush1.xpose.msra.mxu0 0.0
        %1597 = vmatprep.subr.mxu0 0.0
        %1598 = vmatpush1.xpose.msra.mxu0 0.0
        %1599 = vmatprep.subr.mxu0 0.0
        %1600 = vmatpush1.xpose.msra.mxu0 0.0
        %1601 = vmatprep.subr.mxu0 0.0
        %1602 = vmatpush1.xpose.msra.mxu0 0.0
        %1603 = vmatprep.subr.mxu0 0.0
        %1604 = vmatpush1.xpose.msra.mxu0 0.0
        %1605 = vmatprep.mubr.f32.mxu0 0.0
        %1606 = vmatmul.mubr.f32.gmra.mrb[0].mxu0 %v1533
        %v1607 = vpop.f32.mrb[0].mxu0
        %v1608 = vadd.f32 0.0, %v1607
        %v1609 = vpop.f32.mrb[0].mxu0
        %1610 = vmatprep.mubr.f32.mxu0 0.0
        %1611 = vmatmul.mubr.f32.gmra.mrb[0].mxu0 %v1535
        %v1612 = vpop.f32.mrb[0].mxu0
        %v1613 = vadd.f32 0.0, %v1612
        %v1614 = vpop.f32.mrb[0].mxu0
        %1615 = vdwg.mxu0
        %v1616 = vmul.f32 %v1608, 0.17677669
        %v1617 = vmul.f32 %v1613, 0.17677669
        %v1618 = vsel %vm1008, -1e+10, %v1616
        %v1619 = vsel %vm1008, -1e+10, %v1617
        %v1620 = vsel %vm1011, %v1618, -inf
        %1621 = vmax.xlane.f32.xlu0 %v1620
        %v1622 = vpop.xlane.xlu0 %1621
        %v1623 = vsel %vm1011, %v1619, -inf
        %1624 = vmax.xlane.f32.xlu0 %v1623
        %v1625 = vpop.xlane.xlu0 %1624
        %v1626 = vsub.f32 %v1618, %v1622
        %v1627 = vsub.f32 %v1619, %v1625
        %v1628 = vmul.f32 %v1626, 1.442695
        %v1629 = vpow.pop %v1628
        %v1630 = vmul.f32 %v1627, 1.442695
        %v1631 = vpow.pop %v1630
        %v1632 = vsel %vm1011, %v1629, 0.0
        %1633 = vadd.xlane.f32.xlu0 %v1632
        %v1634 = vpop.xlane.xlu0 %1633
        %v1635 = vsel %vm1011, %v1631, 0.0
        %1636 = vadd.xlane.f32.xlu0 %v1635
        %v1637 = vpop.xlane.xlu0 %1636
        %v1638 = vrcp.pop %v1634
        %v1639 = vmul.f32 %v1629, %v1638
        %v1640 = vrcp.pop %v1637
        %v1641 = vmul.f32 %v1631, %v1640
        %1642 = vrot.lane.b32.xlu0 %v904, 32
        %v1643 = vpop.permute.xlu0 %1642
        %1644 = vrot.lane.b32.xlu0 %v909, 32
        %v1645 = vpop.permute.xlu0 %1644
        %v1649 = vsel %vm1011, %v1639, 0
        %v1652 = vsel %vm1011, %v1641, 0
        %1654 = vmatprep.subr.mxu0 0.0
        %1655 = vmatpush1.msra.mxu0 %v1643
        %1656 = vmatprep.subr.mxu0 0.0
        %1657 = vmatpush1.msra.mxu0 %v1645
        %1658 = vmatprep.subr.mxu0 0.0
        %1659 = vmatpush1.msra.mxu0 0.0
        %1660 = vmatprep.subr.mxu0 0.0
        %1661 = vmatpush1.msra.mxu0 0.0
        %1662 = vmatprep.subr.mxu0 0.0
        %1663 = vmatpush1.msra.mxu0 0.0
        %1664 = vmatprep.subr.mxu0 0.0
        %1665 = vmatpush1.msra.mxu0 0.0
        %1666 = vmatprep.subr.mxu0 0.0
        %1667 = vmatpush1.msra.mxu0 0.0
        %1668 = vmatprep.subr.mxu0 0.0
        %1669 = vmatpush1.msra.mxu0 0.0
        %1670 = vmatprep.subr.mxu0 0.0
        %1671 = vmatpush1.msra.mxu0 0.0
        %1672 = vmatprep.subr.mxu0 0.0
        %1673 = vmatpush1.msra.mxu0 0.0
        %1674 = vmatprep.subr.mxu0 0.0
        %1675 = vmatpush1.msra.mxu0 0.0
        %1676 = vmatprep.subr.mxu0 0.0
        %1677 = vmatpush1.msra.mxu0 0.0
        %1678 = vmatprep.subr.mxu0 0.0
        %1679 = vmatpush1.msra.mxu0 0.0
        %1680 = vmatprep.subr.mxu0 0.0
        %1681 = vmatpush1.msra.mxu0 0.0
        %1682 = vmatprep.subr.mxu0 0.0
        %1683 = vmatpush1.msra.mxu0 0.0
        %1684 = vmatprep.subr.mxu0 0.0
        %1685 = vmatpush1.msra.mxu0 0.0
        %1686 = vmatprep.subr.mxu0 0.0
        %1687 = vmatpush1.msra.mxu0 0.0
        %1688 = vmatprep.subr.mxu0 0.0
        %1689 = vmatpush1.msra.mxu0 0.0
        %1690 = vmatprep.subr.mxu0 0.0
        %1691 = vmatpush1.msra.mxu0 0.0
        %1692 = vmatprep.subr.mxu0 0.0
        %1693 = vmatpush1.msra.mxu0 0.0
        %1694 = vmatprep.subr.mxu0 0.0
        %1695 = vmatpush1.msra.mxu0 0.0
        %1696 = vmatprep.subr.mxu0 0.0
        %1697 = vmatpush1.msra.mxu0 0.0
        %1698 = vmatprep.subr.mxu0 0.0
        %1699 = vmatpush1.msra.mxu0 0.0
        %1700 = vmatprep.subr.mxu0 0.0
        %1701 = vmatpush1.msra.mxu0 0.0
        %1702 = vmatprep.subr.mxu0 0.0
        %1703 = vmatpush1.msra.mxu0 0.0
        %1704 = vmatprep.subr.mxu0 0.0
        %1705 = vmatpush1.msra.mxu0 0.0
        %1706 = vmatprep.subr.mxu0 0.0
        %1707 = vmatpush1.msra.mxu0 0.0
        %1708 = vmatprep.subr.mxu0 0.0
        %1709 = vmatpush1.msra.mxu0 0.0
        %1710 = vmatprep.subr.mxu0 0.0
        %1711 = vmatpush1.msra.mxu0 0.0
        %1712 = vmatprep.subr.mxu0 0.0
        %1713 = vmatpush1.msra.mxu0 0.0
        %1714 = vmatprep.subr.mxu0 0.0
        %1715 = vmatpush1.msra.mxu0 0.0
        %1716 = vmatprep.subr.mxu0 0.0
        %1717 = vmatpush1.msra.mxu0 0.0
        %1718 = vmatprep.mubr.f32.mxu0 0.0
        %1719 = vmatmul.mubr.f32.gmra.mrb[0].mxu0 %v1649
        %v1720 = vpop.f32.mrb[0].mxu0
        %v1721 = vadd.f32 0.0, %v1720
        %v1722 = vpop.f32.mrb[0].mxu0
        %1723 = vmatprep.mubr.f32.mxu0 0.0
        %1724 = vmatmul.mubr.f32.gmra.mrb[0].mxu0 %v1652
        %v1725 = vpop.f32.mrb[0].mxu0
        %v1726 = vadd.f32 0.0, %v1725
        %v1727 = vpop.f32.mrb[0].mxu0
        %1728 = vdwg.mxu0
        %1731 = vrot.lane.b32.xlu0 %v1313, 32
        %v1732 = vpop.permute.xlu0 %1731
        %1733 = vrot.lane.b32.xlu0 %v1318, 32
        %v1734 = vpop.permute.xlu0 %1733
        %1739 = vrot.lane.b32.xlu0 %v1517, 64
        %v1740 = vpop.permute.xlu0 %1739
        %1741 = vrot.lane.b32.xlu0 %v1522, 64
        %v1742 = vpop.permute.xlu0 %1741
        %1747 = vrot.lane.b32.xlu0 %v1721, 96
        %v1748 = vpop.permute.xlu0 %1747
        %1749 = vrot.lane.b32.xlu0 %v1726, 96
        %v1750 = vpop.permute.xlu0 %1749
        %v1753 = vsel %vm912, %v1107, %v1732
        %v1754 = vsel %vm912, %v1112, %v1734
        %vm1755 = vcmask 523264
        %v1756 = vsel %vm1755, %v1753, %v1740
        %v1757 = vsel %vm1755, %v1754, %v1742
        %vm1758 = vcmask 785408
        %v1759 = vsel %vm1758, %v1756, %v1748
        %v1760 = vsel %vm1758, %v1757, %v1750
        %v1761 = vld [vmem:[#allocation11] sm:$0xff]
        %v1762 = vld [vmem:[#allocation11 + $0x8] sm:$0xff]
        %v1763 = vld [vmem:[#allocation11 + $0x10] sm:$0xff]
        %v1764 = vld [vmem:[#allocation11 + $0x18] sm:$0xff]
        %v1765 = vld [vmem:[#allocation11 + $0x20] sm:$0xff]
        %v1766 = vld [vmem:[#allocation11 + $0x28] sm:$0xff]
        %v1767 = vld [vmem:[#allocation11 + $0x30] sm:$0xff]
        %v1768 = vld [vmem:[#allocation11 + $0x38] sm:$0xff]
        %v1769 = vld [vmem:[#allocation11 + $0x40] sm:$0xff]
        %v1770 = vld [vmem:[#allocation11 + $0x48] sm:$0xff]
        %v1771 = vld [vmem:[#allocation11 + $0x50] sm:$0xff]
        %v1772 = vld [vmem:[#allocation11 + $0x58] sm:$0xff]
        %v1773 = vld [vmem:[#allocation11 + $0x60] sm:$0xff]
        %v1774 = vld [vmem:[#allocation11 + $0x68] sm:$0xff]
        %v1775 = vld [vmem:[#allocation11 + $0x70] sm:$0xff]
        %v1776 = vld [vmem:[#allocation11 + $0x78] sm:$0xff]
        %v1777 = vld [vmem:[%s12] sm:$0x1]
        %v1779 = vlaneseq
        %v1780 = vshrl.u32 %v1779, 7
        %v1781 = vsub.s32 0, %v1780
        %v1782 = vrot.slane %v1777, %v1781
        %1784 = vmatprep.subr.mxu0 0.0
        %1785 = vmatpush1.msra.mxu0 %v1761
        %1786 = vmatprep.subr.mxu0 0.0
        %1787 = vmatpush1.msra.mxu0 %v1762
        %1788 = vmatprep.subr.mxu0 0.0
        %1789 = vmatpush1.msra.mxu0 %v1763
        %1790 = vmatprep.subr.mxu0 0.0
        %1791 = vmatpush1.msra.mxu0 %v1764
        %1792 = vmatprep.subr.mxu0 0.0
        %1793 = vmatpush1.msra.mxu0 %v1765
        %1794 = vmatprep.subr.mxu0 0.0
        %1795 = vmatpush1.msra.mxu0 %v1766
        %1796 = vmatprep.subr.mxu0 0.0
        %1797 = vmatpush1.msra.mxu0 %v1767
        %1798 = vmatprep.subr.mxu0 0.0
        %1799 = vmatpush1.msra.mxu0 %v1768
        %1800 = vmatprep.subr.mxu0 0.0
        %1801 = vmatpush1.msra.mxu0 %v1769
        %1802 = vmatprep.subr.mxu0 0.0
        %1803 = vmatpush1.msra.mxu0 %v1770
        %1804 = vmatprep.subr.mxu0 0.0
        %1805 = vmatpush1.msra.mxu0 %v1771
        %1806 = vmatprep.subr.mxu0 0.0
        %1807 = vmatpush1.msra.mxu0 %v1772
        %1808 = vmatprep.subr.mxu0 0.0
        %1809 = vmatpush1.msra.mxu0 %v1773
        %1810 = vmatprep.subr.mxu0 0.0
        %1811 = vmatpush1.msra.mxu0 %v1774
        %1812 = vmatprep.subr.mxu0 0.0
        %1813 = vmatpush1.msra.mxu0 %v1775
        %1814 = vmatprep.subr.mxu0 0.0
        %1815 = vmatpush1.msra.mxu0 %v1776
        %1816 = vmatprep.subr.mxu0 0.0
        %1817 = vmatpush1.msra.mxu0 0.0
        %1818 = vmatprep.subr.mxu0 0.0
        %1819 = vmatpush1.msra.mxu0 0.0
        %1820 = vmatprep.subr.mxu0 0.0
        %1821 = vmatpush1.msra.mxu0 0.0
        %1822 = vmatprep.subr.mxu0 0.0
        %1823 = vmatpush1.msra.mxu0 0.0
        %1824 = vmatprep.subr.mxu0 0.0
        %1825 = vmatpush1.msra.mxu0 0.0
        %1826 = vmatprep.subr.mxu0 0.0
        %1827 = vmatpush1.msra.mxu0 0.0
        %1828 = vmatprep.subr.mxu0 0.0
        %1829 = vmatpush1.msra.mxu0 0.0
        %1830 = vmatprep.subr.mxu0 0.0
        %1831 = vmatpush1.msra.mxu0 0.0
        %1832 = vmatprep.subr.mxu0 0.0
        %1833 = vmatpush1.msra.mxu0 0.0
        %1834 = vmatprep.subr.mxu0 0.0
        %1835 = vmatpush1.msra.mxu0 0.0
        %1836 = vmatprep.subr.mxu0 0.0
        %1837 = vmatpush1.msra.mxu0 0.0
        %1838 = vmatprep.subr.mxu0 0.0
        %1839 = vmatpush1.msra.mxu0 0.0
        %1840 = vmatprep.subr.mxu0 0.0
        %1841 = vmatpush1.msra.mxu0 0.0
        %1842 = vmatprep.subr.mxu0 0.0
        %1843 = vmatpush1.msra.mxu0 0.0
        %1844 = vmatprep.subr.mxu0 0.0
        %1845 = vmatpush1.msra.mxu0 0.0
        %1846 = vmatprep.subr.mxu0 0.0
        %1847 = vmatpush1.msra.mxu0 0.0
        %1848 = vmatprep.mubr.f32.mxu0 0.0
        %1849 = vmatmul.mubr.f32.gmra.mrb[0].mxu0 %v1759
        %v1850 = vpop.f32.mrb[0].mxu0
        %v1851 = vadd.f32 %v1782, %v1850
        %v1852 = vpop.f32.mrb[0].mxu0
        %1853 = vmatprep.mubr.f32.mxu0 0.0
        %1854 = vmatmul.mubr.f32.gmra.mrb[0].mxu0 %v1760
        %v1855 = vpop.f32.mrb[0].mxu0
        %v1856 = vadd.f32 %v1782, %v1855
        %v1857 = vpop.f32.mrb[0].mxu0
        %1858 = vdwg.mxu0
        %v1859 = vld [vmem:[%s610] sm:$0xff]
        %v1860 = vld [vmem:[%s610 + $0x8] sm:$0xff]
        %1862 = vset.pattern.permute.xlu0 0
        %1863 = vperm.xlu0 %1862, %v1859
        %v1864 = vpop.permute.xlu0 %1863
        %1867 = vset.pattern.permute.xlu0 0
        %1868 = vperm.xlu0 %1867, %v1860
        %v1869 = vpop.permute.xlu0 %1868
        %v1871 = vmul.f32 %v1851, %v1864
        %v1872 = vmul.f32 %v1856, %v1869
        %1873 = vst [vmem:[%s597] sm:$0xff] %v1871
        %1874 = vst [vmem:[%s597 + $0x8] sm:$0xff] %v1872
        %s1875 = sand.u32 %s341, 1
        %s1876 = scalar_lea.sflag [#allocation4], %s1875
        %s1877 = sand.u32 %s341, 1
        %s1878 = smul.addr %s1877, 16
        %s1879 = scalar_lea.vmem [#allocation13], %s1878
        // Predicated region
        $region97: #{tpu_custom_call.1} parent=71 // pred_check
          %p1880 = pneg %p351
        $region98: #{tpu_custom_call.1} parent=71 // pred_check_branch
          %1882 = sbr.rel (%p1880) target = $region100
        $region99: #{tpu_custom_call.1} parent=71 // pred_region
          %s1884 = ssub.s32 256, 256
          %1885 = vsyncadd %s1876, %s1884
          %s1886 = smul.addr %s35, 2
          %s1887 = smul.addr %s1886, 128
          %s1888 = scalar_lea.hbm %s13, %s1887
          %s1889 = sshll.u32 %s1879, 4
          %s1890 = int_to_ptr.vmem [resolvable:$true] %s1889
          %1895 = dma.vmem_to_hbm [thread:$0]  %s1890, 256, %s1888, %s1876, 128, 128, 8
        $region100: #{tpu_custom_call.1} parent=71 // pred_fallthru
          _
      $region72: #{tpu_custom_call.1} parent=5 // pred_fallthru
        _
      %p1896 = scmp.le.s32.totalorder 2, %s30
      // Predicated region
      $region101: #{tpu_custom_call.1} parent=5 // pred_check
        %p1897 = pneg %p1896
      $region102: #{tpu_custom_call.1} parent=5 // pred_check_branch
        %1899 = sbr.rel (%p1897) target = $region104
      $region103: #{tpu_custom_call.1} parent=5 // pred_region
        %s1900 = ssub.s32 %s30, 2
        // Predicated region
        $region105: #{tpu_custom_call.1} parent=103 // pred_check
          %p1901 = pneg %p357
        $region106: #{tpu_custom_call.1} parent=103 // pred_check_branch
          %1903 = sbr.rel (%p1901) target = $region108
        $region107: #{tpu_custom_call.1} parent=103 // pred_region
          %s1904 = sand.u32 %s342, 1
          %s1905 = scalar_lea.sflag [#allocation4], %s1904
          %s1906 = sand.u32 %s342, 1
          %s1907 = smul.addr %s1906, 16
          %s1908 = scalar_lea.vmem [#allocation13], %s1907
          %1909 = dma.done %s1905, 256
        $region108: #{tpu_custom_call.1} parent=103 // pred_fallthru
          _
      $region104: #{tpu_custom_call.1} parent=5 // pred_fallthru
        _
    $region6: #{tpu_custom_call.1} parent=1 // loop_footer
      %s34 = sadd.s32 1, %s30
    $region7: #{tpu_custom_call.1} parent=1 // loop_footer_branch
      %29 = sbr.rel target = $region3
    $region8: #{tpu_custom_call.1} parent=1 // loop_exit
      _
    %1910 = vsyncpa [#allocation3], 1
    %s1911 = scalar_lea.sflag [#allocation3], 1
    %1912 = vsyncpa %s1911, 1
    %1913 = vsyncpa [#allocation6], 1
    %s1914 = scalar_lea.sflag [#allocation6], 1
    %1915 = vsyncpa %s1914, 1
    %1916 = vsyncpa [#allocation9], 1
    %1917 = vsyncpa [#allocation12], 1
    %1918 = vsyncpa [#allocation4], 1
    %s1919 = scalar_lea.sflag [#allocation4], 1
    %1920 = vsyncpa %s1919, 1

</llo_original>
